<compile_context>
chip_gen: v6e
topology: v6e:2x2x1
jax: 0.10.0
libtpu: 0.0.40
codegen_flags: <defaults>
</compile_context>

<pallas_src>
import jax
import jax.numpy as jnp
from jax.experimental import pallas as pl
from jax.experimental.pallas import tpu as pltpu

EPS = 1e-6
NUM_GROUPS = 32            # GroupNorm(num_groups=32)
_VMEM_LIMIT = 32 << 20     # scoped VMEM to request (safe on v5e/v6e/v7x)
_BLOCK_BUDGET = 20 << 20   # conservative budget for per-step block residency


# ----------------------------- in-kernel helpers -----------------------------

def _group_norm(x3, gt, gtt, gamma, beta):
    """x3: (NB, T, C) f32; gt: (NG, C) one-hot membership; gtt: (C, NG)."""
    NB, T, C = x3.shape
    inv_n = 1.0 / float(T * (C // NUM_GROUPS))
    s1 = jnp.sum(x3, axis=1)                                  # (NB, C)
    s2 = jnp.sum(x3 * x3, axis=1)                             # (NB, C)
    # fused group reduction: one (2*NB, C) @ (C, NG) MXU push
    gs = jnp.dot(jnp.concatenate([s1, s2], axis=0), gtt,
                 preferred_element_type=jnp.float32)          # (2*NB, NG)
    mean_g = gs[:NB] * inv_n
    var_g = gs[NB:] * inv_n - mean_g * mean_g
    inv_g = jax.lax.rsqrt(var_g + EPS)
    # broadcast back to channels: one (2*NB, NG) @ (NG, C) push
    mi = jnp.dot(jnp.concatenate([mean_g, inv_g], axis=0), gt,
                 preferred_element_type=jnp.float32)          # (2*NB, C)
    mean_c, inv_c = mi[:NB], mi[NB:]
    # fold the affine: big tile only sees x*scale + shift (2 VPU ops/elem)
    scale = inv_c * gamma                                     # (NB, C)
    shift = beta - mean_c * scale                             # (NB, C)
    return x3 * scale[:, None, :] + shift[:, None, :]


def _silu(x):
    return x * jax.nn.sigmoid(x)


def _conv1d_k3(h3, w_taps, bias):
    """'same' Conv1d(k=3, pad=1) over (NB, T, C), channels-last.

    h3: (NB, T, C) f32; w_taps: (3, Cin, Cout) bf16 (tap k pairs with x[t-1+k]);
    bias: (1, Cout) f32.  Returns (NB*T, Cout) f32.
    Shifted taps are built by zero-row concat + static slice along T (layout
    copies only, correct per-batch zero padding by construction).
    """
    NB, T, C = h3.shape
    M = NB * T
    dt = w_taps.dtype
    hb = h3.astype(dt)                                        # cast to bf16 once
    z = jnp.zeros((NB, 1, C), dt)
    h_prev = jnp.concatenate([z, hb[:, :T - 1, :]], axis=1).reshape(M, C)
    h_next = jnp.concatenate([hb[:, 1:, :], z], axis=1).reshape(M, C)
    h_cur = hb.reshape(M, C)
    # three accumulating MXU dots (no (M,3C) concat materialization)
    out = jnp.dot(h_prev, w_taps[0], preferred_element_type=jnp.float32)
    out = out + jnp.dot(h_cur, w_taps[1], preferred_element_type=jnp.float32)
    out = out + jnp.dot(h_next, w_taps[2], preferred_element_type=jnp.float32)
    return out + bias


# --------------------------------- kernel ------------------------------------

def _resblock_kernel(x_ref, gt_ref, gtt_ref,
                     g1_ref, b1_ref, w1_ref, cb1_ref,
                     g2_ref, b2_ref, w2_ref, cb2_ref,
                     o_ref):
    NB, T, C = x_ref.shape
    gt = gt_ref[...]
    gtt = gtt_ref[...]

    h = _group_norm(x_ref[...].astype(jnp.float32), gt, gtt,
                    g1_ref[...], b1_ref[...])
    h = _silu(h)
    h = _conv1d_k3(h, w1_ref[...], cb1_ref[...]).reshape(NB, T, C)
    # TODO(synk): temb projection skipped (temb=None in this forward).
    h = _group_norm(h, gt, gtt, g2_ref[...], b2_ref[...])
    h = _silu(h)
    # TODO(synk): dropout (p=0.0) is a no-op and omitted.
    h = _conv1d_k3(h, w2_ref[...], cb2_ref[...]).reshape(NB, T, C)

    # residual: re-read x from its VMEM block (don't keep an f32 copy live).
    o_ref[...] = (x_ref[...].astype(jnp.float32) + h).astype(o_ref.dtype)


# ------------------------------- pallas wrapper -------------------------------

def _full_spec(shape):
    nd = len(shape)
    return pl.BlockSpec(shape, lambda b, _nd=nd: (0,) * _nd)


def _num_parallel_cores():
    """2 TensorCores/device on v7x (and megacore v4/v5p); 1 on v5e/v6e."""
    try:
        kind = jax.devices()[0].device_kind.lower()
    except Exception:
        return 1
    return 2 if any(tag in kind for tag in ("v7", "7x", "v4", "v5p")) else 1


def _pick_nb(B, T, C, in_itemsize):
    """Batch rows per grid step.

    Per-row VMEM model: x block + out block (double buffered, I/O dtype),
    one f32 working copy, three bf16 shifted tap copies, plus headroom.
    """
    bytes_per_row = C * (4 * in_itemsize + 4 * in_itemsize + 4 + 3 * 2 + 16)
    max_rows = max(T, _BLOCK_BUDGET // bytes_per_row)  # full T is required
    n_par = _num_parallel_cores()
    best = 1
    for nb in range(1, B + 1):
        if B % nb:
            continue
        if nb * T > max_rows:
            continue
        if n_par > 1 and B >= n_par and (B // nb) < n_par:
            continue  # keep both v7x TensorCores busy
        best = nb
    return best


def resnet_block_forward(x_btc, p, nb=None):
    """x_btc: (B, T, C) channels-last activations (bf16 or f32).

    Returns (B, T, C) in the same dtype as the input (no layout transposes).
    """
    B, T, C = x_btc.shape
    assert C % NUM_GROUPS == 0, "GroupNorm(32) requires C % 32 == 0"
    nb = _pick_nb(B, T, C, x_btc.dtype.itemsize) if nb is None else nb
    assert B % nb == 0

    weights = [p['gt'], p['gtt'], p['g1'], p['b1'], p['w1'], p['cb1'],
               p['g2'], p['b2'], p['w2'], p['cb2']]
    in_specs = ([pl.BlockSpec((nb, T, C), lambda b: (b, 0, 0))]
                + [_full_spec(w.shape) for w in weights])

    flops = 12 * B * T * C * C                       # two k=3 convs on the MXU
    bytes_accessed = (2 * B * T * C * x_btc.dtype.itemsize
                      + sum(int(w.size) * w.dtype.itemsize for w in weights))
    cost = pl.CostEstimate(flops=flops, transcendentals=2 * B * T * C,
                           bytes_accessed=bytes_accessed)

    return pl.pallas_call(
        _resblock_kernel,
        out_shape=jax.ShapeDtypeStruct((B, T, C), x_btc.dtype),
        grid=(B // nb,),
        in_specs=in_specs,
        out_specs=pl.BlockSpec((nb, T, C), lambda b: (b, 0, 0)),
        compiler_params=pltpu.CompilerParams(
            dimension_semantics=("parallel",),
            vmem_limit_bytes=_VMEM_LIMIT),
        cost_estimate=cost,
    )(x_btc, *weights)


def resnet_block_forward_nct(x_nct, p, nb=None):
    """Adapter for PyTorch Conv1d (B, C, T) callers; transposes done in bf16."""
    x = jnp.transpose(x_nct.astype(jnp.bfloat16), (0, 2, 1))
    return jnp.transpose(resnet_block_forward(x, p, nb=nb), (0, 2, 1))


# ----------------------------- deterministic init -----------------------------

def init_params(key, dim):
    assert dim % NUM_GROUPS == 0, "GroupNorm(32) requires dim % 32 == 0"
    kc1, kc2, kn1, kn2 = jax.random.split(key, 4)

    def conv3(k):
        kw, kb = jax.random.split(k)
        w = jax.random.normal(kw, (dim, dim, 3), jnp.float32) * 0.05  # (Cout,Cin,K)
        b = jax.random.normal(kb, (dim,), jnp.float32) * 0.02
        # channels-last taps: taps[k] pairs with x[t-1+k]  (Conv1d k=3, pad=1)
        taps = jnp.transpose(w, (2, 1, 0)).astype(jnp.bfloat16)       # (3,Cin,Cout)
        return w, taps, b.reshape(1, dim)

    def norm(k):
        kg, kb = jax.random.split(k)
        g = 1.0 + 0.1 * jax.random.normal(kg, (1, dim), jnp.float32)
        b = 0.1 * jax.random.normal(kb, (1, dim), jnp.float32)
        return g, b

    w1_raw, w1, cb1 = conv3(kc1)
    w2_raw, w2, cb2 = conv3(kc2)
    g1, b1 = norm(kn1)
    g2, b2 = norm(kn2)

    gsize = dim // NUM_GROUPS
    gt = (jnp.arange(dim)[None, :] // gsize
          == jnp.arange(NUM_GROUPS)[:, None]).astype(jnp.float32)     # (NG, C)
    return dict(gt=gt, gtt=jnp.transpose(gt), g1=g1, b1=b1, w1=w1, cb1=cb1,
                g2=g2, b2=b2, w2=w2, cb2=cb2,
                w1_raw=w1_raw, w2_raw=w2_raw)


# ------------------------------ pure-JAX reference -----------------------------

def _ref_group_norm(x, g, b):
    B, T, C = x.shape
    xg = x.reshape(B, T, NUM_GROUPS, C // NUM_GROUPS)
    mean = xg.mean(axis=(1, 3), keepdims=True)
    var = jnp.mean((xg - mean) ** 2, axis=(1, 3), keepdims=True)
    xn = (xg - mean) / jnp.sqrt(var + EPS)
    return xn.reshape(B, T, C) * g + b


def _ref_conv3(x, w_oik, bias):
    taps = jnp.transpose(w_oik, (2, 1, 0))                            # (3,Cin,Cout)
    xp = jnp.pad(x, ((0, 0), (1, 1), (0, 0)))
    h = jnp.einsum('btc,cd->btd', xp[:, :-2], taps[0], precision='highest')
    h = h + jnp.einsum('btc,cd->btd', xp[:, 1:-1], taps[1], precision='highest')
    h = h + jnp.einsum('btc,cd->btd', xp[:, 2:], taps[2], precision='highest')
    return h + bias


def ref_forward(x_btc, p):
    x = x_btc.astype(jnp.float32)
    h = _ref_group_norm(x, p['g1'], p['b1'])
    h = h * jax.nn.sigmoid(h)
    h = _ref_conv3(h, p['w1_raw'], p['cb1'])
    h = _ref_group_norm(h, p['g2'], p['b2'])
    h = h * jax.nn.sigmoid(h)
    h = _ref_conv3(h, p['w2_raw'], p['cb2'])
    return x + h


# ------------------------------------ main -------------------------------------

if __name__ == "__main__":
    # C must be a multiple of 32 (GroupNorm); C=128 keeps loads/stores
    # lane-dense.  Activations are channels-last (B, T, C) and bf16 at the
    # kernel boundary: no wrapper-side HBM transposes, halved HBM traffic.
    dim, B, T = 128, 4, 16

    key = jax.random.PRNGKey(0)
    kp, kx = jax.random.split(key)
    params = init_params(kp, dim)
    x = jax.random.normal(kx, (B, T, dim), jnp.float32).astype(jnp.bfloat16)

    out = jax.jit(resnet_block_forward)(x, params)
    out = jax.block_until_ready(out)
    assert out.shape == (B, T, dim) and out.dtype == jnp.bfloat16

    ref = ref_forward(x, params)                       # f32 ref from bf16 input
    err = float(jnp.max(jnp.abs(out.astype(jnp.float32) - ref)))
    # bf16 matmul operands + bf16 output rounding; f32 accumulation/statistics.
    assert err < 1.5e-1, f"max abs err {err}"

    print("KERNEL_OK")
</pallas_src>

<mosaic_0001>
module attributes {stable_mosaic.version = 11 : i64} {
  func.func @_resblock_kernel(%arg0: i32, %arg1: memref<4x16x128xbf16, #tpu.memory_space<vmem>>, %arg2: memref<32x128xf32, #tpu.memory_space<vmem>>, %arg3: memref<128x32xf32, #tpu.memory_space<vmem>>, %arg4: memref<1x128xf32, #tpu.memory_space<vmem>>, %arg5: memref<1x128xf32, #tpu.memory_space<vmem>>, %arg6: memref<3x128x128xbf16, #tpu.memory_space<vmem>>, %arg7: memref<1x128xf32, #tpu.memory_space<vmem>>, %arg8: memref<1x128xf32, #tpu.memory_space<vmem>>, %arg9: memref<1x128xf32, #tpu.memory_space<vmem>>, %arg10: memref<3x128x128xbf16, #tpu.memory_space<vmem>>, %arg11: memref<1x128xf32, #tpu.memory_space<vmem>>, %arg12: memref<4x16x128xbf16, #tpu.memory_space<vmem>>) attributes {dimension_semantics = [#tpu.dimension_semantics<parallel>], iteration_bounds = array<i64: 1>, scalar_prefetch = 0 : i64, scratch_operands = 0 : i64, tpu.core_type = #tpu.core_type<tc>, window_params = [{transform_indices = @transform_0, window_bounds = array<i64: 4, 16, 128>}, {pipeline_mode = #tpu.pipeline_mode<synchronous>, transform_indices = @transform_1, window_bounds = array<i64: 32, 128>}, {pipeline_mode = #tpu.pipeline_mode<synchronous>, transform_indices = @transform_2, window_bounds = array<i64: 128, 32>}, {pipeline_mode = #tpu.pipeline_mode<synchronous>, transform_indices = @transform_3, window_bounds = array<i64: 1, 128>}, {pipeline_mode = #tpu.pipeline_mode<synchronous>, transform_indices = @transform_4, window_bounds = array<i64: 1, 128>}, {pipeline_mode = #tpu.pipeline_mode<synchronous>, transform_indices = @transform_5, window_bounds = array<i64: 3, 128, 128>}, {pipeline_mode = #tpu.pipeline_mode<synchronous>, transform_indices = @transform_6, window_bounds = array<i64: 1, 128>}, {pipeline_mode = #tpu.pipeline_mode<synchronous>, transform_indices = @transform_7, window_bounds = array<i64: 1, 128>}, {pipeline_mode = #tpu.pipeline_mode<synchronous>, transform_indices = @transform_8, window_bounds = array<i64: 1, 128>}, {pipeline_mode = #tpu.pipeline_mode<synchronous>, transform_indices = @transform_9, window_bounds = array<i64: 3, 128, 128>}, {pipeline_mode = #tpu.pipeline_mode<synchronous>, transform_indices = @transform_10, window_bounds = array<i64: 1, 128>}, {transform_indices = @transform_11, window_bounds = array<i64: 4, 16, 128>}]} {
    %c0 = arith.constant 0 : index
    %c0_0 = arith.constant 0 : index
    %0 = vector.load %arg2[%c0, %c0_0] : memref<32x128xf32, #tpu.memory_space<vmem>>, vector<32x128xf32>
    %c0_1 = arith.constant 0 : index
    %c0_2 = arith.constant 0 : index
    %1 = vector.load %arg3[%c0_1, %c0_2] : memref<128x32xf32, #tpu.memory_space<vmem>>, vector<128x32xf32>
    %c0_3 = arith.constant 0 : index
    %c0_4 = arith.constant 0 : index
    %c0_5 = arith.constant 0 : index
    %2 = vector.load %arg1[%c0_3, %c0_4, %c0_5] : memref<4x16x128xbf16, #tpu.memory_space<vmem>>, vector<4x16x128xbf16>
    %3 = arith.extf %2 : vector<4x16x128xbf16> to vector<4x16x128xf32>
    %c0_6 = arith.constant 0 : index
    %c0_7 = arith.constant 0 : index
    %4 = vector.load %arg4[%c0_6, %c0_7] : memref<1x128xf32, #tpu.memory_space<vmem>>, vector<1x128xf32>
    %c0_8 = arith.constant 0 : index
    %c0_9 = arith.constant 0 : index
    %5 = vector.load %arg5[%c0_8, %c0_9] : memref<1x128xf32, #tpu.memory_space<vmem>>, vector<1x128xf32>
    %cst = arith.constant dense<0.000000e+00> : vector<4x128xf32>
    %6 = vector.multi_reduction <add>, %3, %cst [1] : vector<4x16x128xf32> to vector<4x128xf32>
    %7 = arith.mulf %3, %3 : vector<4x16x128xf32>
    %cst_10 = arith.constant dense<0.000000e+00> : vector<4x128xf32>
    %8 = vector.multi_reduction <add>, %7, %cst_10 [1] : vector<4x16x128xf32> to vector<4x128xf32>
    %9 = tpu.concatenate %6, %8 in 0 : vector<4x128xf32>, vector<4x128xf32> -> vector<8x128xf32>
    %cst_11 = arith.constant dense<0.000000e+00> : vector<8x32xf32>
    %10 = tpu.matmul %9, %1, %cst_11 {dimension_numbers = #tpu.dot_dimension_numbers<[1], [0], [0], [1], [0, 0, 1, 1], [], []>} : vector<8x128xf32>, vector<128x32xf32>, vector<8x32xf32> -> vector<8x32xf32>
    %11 = vector.extract_strided_slice %10 {offsets = [0, 0], sizes = [4, 32], strides = [1, 1]} : vector<8x32xf32> to vector<4x32xf32>
    %cst_12 = arith.constant 1.562500e-02 : f32
    %12 = vector.broadcast %cst_12 : f32 to vector<4x32xf32>
    %13 = arith.mulf %11, %12 : vector<4x32xf32>
    %14 = vector.extract_strided_slice %10 {offsets = [4, 0], sizes = [4, 32], strides = [1, 1]} : vector<8x32xf32> to vector<4x32xf32>
    %cst_13 = arith.constant 1.562500e-02 : f32
    %15 = vector.broadcast %cst_13 : f32 to vector<4x32xf32>
    %16 = arith.mulf %14, %15 : vector<4x32xf32>
    %17 = arith.mulf %13, %13 : vector<4x32xf32>
    %18 = arith.subf %16, %17 : vector<4x32xf32>
    %cst_14 = arith.constant 9.99999997E-7 : f32
    %19 = vector.broadcast %cst_14 : f32 to vector<4x32xf32>
    %20 = arith.addf %18, %19 : vector<4x32xf32>
    %21 = math.rsqrt %20 : vector<4x32xf32>
    %22 = tpu.concatenate %13, %21 in 0 : vector<4x32xf32>, vector<4x32xf32> -> vector<8x32xf32>
    %cst_15 = arith.constant dense<0.000000e+00> : vector<8x128xf32>
    %23 = tpu.matmul %22, %0, %cst_15 {dimension_numbers = #tpu.dot_dimension_numbers<[1], [0], [0], [1], [0, 0, 1, 1], [], []>} : vector<8x32xf32>, vector<32x128xf32>, vector<8x128xf32> -> vector<8x128xf32>
    %24 = vector.extract_strided_slice %23 {offsets = [0, 0], sizes = [4, 128], strides = [1, 1]} : vector<8x128xf32> to vector<4x128xf32>
    %25 = vector.extract_strided_slice %23 {offsets = [4, 0], sizes = [4, 128], strides = [1, 1]} : vector<8x128xf32> to vector<4x128xf32>
    %26 = vector.broadcast %4 : vector<1x128xf32> to vector<4x128xf32>
    %27 = arith.mulf %25, %26 : vector<4x128xf32>
    %28 = arith.mulf %24, %27 : vector<4x128xf32>
    %29 = vector.broadcast %5 : vector<1x128xf32> to vector<4x128xf32>
    %30 = arith.subf %29, %28 : vector<4x128xf32>
    %31 = vector.shape_cast %27 : vector<4x128xf32> to vector<4x1x128xf32>
    %32 = vector.broadcast %31 : vector<4x1x128xf32> to vector<4x16x128xf32>
    %33 = arith.mulf %3, %32 : vector<4x16x128xf32>
    %34 = vector.shape_cast %30 : vector<4x128xf32> to vector<4x1x128xf32>
    %35 = vector.broadcast %34 : vector<4x1x128xf32> to vector<4x16x128xf32>
    %36 = arith.addf %33, %35 : vector<4x16x128xf32>
    %37 = arith.negf %36 : vector<4x16x128xf32>
    %38 = math.exp %37 : vector<4x16x128xf32>
    %cst_16 = arith.constant 1.000000e+00 : f32
    %39 = vector.broadcast %cst_16 : f32 to vector<4x16x128xf32>
    %40 = arith.addf %39, %38 : vector<4x16x128xf32>
    %41 = arith.divf %39, %40 : vector<4x16x128xf32>
    %42 = arith.mulf %36, %41 : vector<4x16x128xf32>
    %c0_17 = arith.constant 0 : index
    %c0_18 = arith.constant 0 : index
    %c0_19 = arith.constant 0 : index
    %43 = vector.load %arg6[%c0_17, %c0_18, %c0_19] : memref<3x128x128xbf16, #tpu.memory_space<vmem>>, vector<3x128x128xbf16>
    %c0_20 = arith.constant 0 : index
    %c0_21 = arith.constant 0 : index
    %44 = vector.load %arg7[%c0_20, %c0_21] : memref<1x128xf32, #tpu.memory_space<vmem>>, vector<1x128xf32>
    %45 = arith.truncf %42 : vector<4x16x128xf32> to vector<4x16x128xbf16>
    %cst_22 = arith.constant 0.000000e+00 : bf16
    %46 = vector.broadcast %cst_22 : bf16 to vector<4x1x128xbf16>
    %47 = vector.extract_strided_slice %45 {offsets = [0, 0, 0], sizes = [4, 15, 128], strides = [1, 1, 1]} : vector<4x16x128xbf16> to vector<4x15x128xbf16>
    %48 = tpu.concatenate %46, %47 in 1 : vector<4x1x128xbf16>, vector<4x15x128xbf16> -> vector<4x16x128xbf16>
    %49 = vector.shape_cast %48 : vector<4x16x128xbf16> to vector<64x128xbf16>
    %50 = vector.extract_strided_slice %45 {offsets = [0, 1, 0], sizes = [4, 15, 128], strides = [1, 1, 1]} : vector<4x16x128xbf16> to vector<4x15x128xbf16>
    %51 = tpu.concatenate %50, %46 in 1 : vector<4x15x128xbf16>, vector<4x1x128xbf16> -> vector<4x16x128xbf16>
    %52 = vector.shape_cast %51 : vector<4x16x128xbf16> to vector<64x128xbf16>
    %53 = vector.shape_cast %45 : vector<4x16x128xbf16> to vector<64x128xbf16>
    %54 = vector.extract_strided_slice %43 {offsets = [0, 0, 0], sizes = [1, 128, 128], strides = [1, 1, 1]} : vector<3x128x128xbf16> to vector<1x128x128xbf16>
    %55 = vector.shape_cast %54 : vector<1x128x128xbf16> to vector<128x128xbf16>
    %cst_23 = arith.constant dense<0.000000e+00> : vector<64x128xf32>
    %56 = tpu.matmul %49, %55, %cst_23 {dimension_numbers = #tpu.dot_dimension_numbers<[1], [0], [0], [1], [0, 0, 1, 1], [], []>} : vector<64x128xbf16>, vector<128x128xbf16>, vector<64x128xf32> -> vector<64x128xf32>
    %57 = vector.extract_strided_slice %43 {offsets = [1, 0, 0], sizes = [1, 128, 128], strides = [1, 1, 1]} : vector<3x128x128xbf16> to vector<1x128x128xbf16>
    %58 = vector.shape_cast %57 : vector<1x128x128xbf16> to vector<128x128xbf16>
    %cst_24 = arith.constant dense<0.000000e+00> : vector<64x128xf32>
    %59 = tpu.matmul %53, %58, %cst_24 {dimension_numbers = #tpu.dot_dimension_numbers<[1], [0], [0], [1], [0, 0, 1, 1], [], []>} : vector<64x128xbf16>, vector<128x128xbf16>, vector<64x128xf32> -> vector<64x128xf32>
    %60 = arith.addf %56, %59 : vector<64x128xf32>
    %61 = vector.extract_strided_slice %43 {offsets = [2, 0, 0], sizes = [1, 128, 128], strides = [1, 1, 1]} : vector<3x128x128xbf16> to vector<1x128x128xbf16>
    %62 = vector.shape_cast %61 : vector<1x128x128xbf16> to vector<128x128xbf16>
    %cst_25 = arith.constant dense<0.000000e+00> : vector<64x128xf32>
    %63 = tpu.matmul %52, %62, %cst_25 {dimension_numbers = #tpu.dot_dimension_numbers<[1], [0], [0], [1], [0, 0, 1, 1], [], []>} : vector<64x128xbf16>, vector<128x128xbf16>, vector<64x128xf32> -> vector<64x128xf32>
    %64 = arith.addf %60, %63 : vector<64x128xf32>
    %65 = vector.broadcast %44 : vector<1x128xf32> to vector<64x128xf32>
    %66 = arith.addf %64, %65 : vector<64x128xf32>
    %67 = vector.shape_cast %66 : vector<64x128xf32> to vector<4x16x128xf32>
    %c0_26 = arith.constant 0 : index
    %c0_27 = arith.constant 0 : index
    %68 = vector.load %arg8[%c0_26, %c0_27] : memref<1x128xf32, #tpu.memory_space<vmem>>, vector<1x128xf32>
    %c0_28 = arith.constant 0 : index
    %c0_29 = arith.constant 0 : index
    %69 = vector.load %arg9[%c0_28, %c0_29] : memref<1x128xf32, #tpu.memory_space<vmem>>, vector<1x128xf32>
    %cst_30 = arith.constant dense<0.000000e+00> : vector<4x128xf32>
    %70 = vector.multi_reduction <add>, %67, %cst_30 [1] : vector<4x16x128xf32> to vector<4x128xf32>
    %71 = arith.mulf %67, %67 : vector<4x16x128xf32>
    %cst_31 = arith.constant dense<0.000000e+00> : vector<4x128xf32>
    %72 = vector.multi_reduction <add>, %71, %cst_31 [1] : vector<4x16x128xf32> to vector<4x128xf32>
    %73 = tpu.concatenate %70, %72 in 0 : vector<4x128xf32>, vector<4x128xf32> -> vector<8x128xf32>
    %cst_32 = arith.constant dense<0.000000e+00> : vector<8x32xf32>
    %74 = tpu.matmul %73, %1, %cst_32 {dimension_numbers = #tpu.dot_dimension_numbers<[1], [0], [0], [1], [0, 0, 1, 1], [], []>} : vector<8x128xf32>, vector<128x32xf32>, vector<8x32xf32> -> vector<8x32xf32>
    %75 = vector.extract_strided_slice %74 {offsets = [0, 0], sizes = [4, 32], strides = [1, 1]} : vector<8x32xf32> to vector<4x32xf32>
    %cst_33 = arith.constant 1.562500e-02 : f32
    %76 = vector.broadcast %cst_33 : f32 to vector<4x32xf32>
    %77 = arith.mulf %75, %76 : vector<4x32xf32>
    %78 = vector.extract_strided_slice %74 {offsets = [4, 0], sizes = [4, 32], strides = [1, 1]} : vector<8x32xf32> to vector<4x32xf32>
    %cst_34 = arith.constant 1.562500e-02 : f32
    %79 = vector.broadcast %cst_34 : f32 to vector<4x32xf32>
    %80 = arith.mulf %78, %79 : vector<4x32xf32>
    %81 = arith.mulf %77, %77 : vector<4x32xf32>
    %82 = arith.subf %80, %81 : vector<4x32xf32>
    %cst_35 = arith.constant 9.99999997E-7 : f32
    %83 = vector.broadcast %cst_35 : f32 to vector<4x32xf32>
    %84 = arith.addf %82, %83 : vector<4x32xf32>
    %85 = math.rsqrt %84 : vector<4x32xf32>
    %86 = tpu.concatenate %77, %85 in 0 : vector<4x32xf32>, vector<4x32xf32> -> vector<8x32xf32>
    %cst_36 = arith.constant dense<0.000000e+00> : vector<8x128xf32>
    %87 = tpu.matmul %86, %0, %cst_36 {dimension_numbers = #tpu.dot_dimension_numbers<[1], [0], [0], [1], [0, 0, 1, 1], [], []>} : vector<8x32xf32>, vector<32x128xf32>, vector<8x128xf32> -> vector<8x128xf32>
    %88 = vector.extract_strided_slice %87 {offsets = [0, 0], sizes = [4, 128], strides = [1, 1]} : vector<8x128xf32> to vector<4x128xf32>
    %89 = vector.extract_strided_slice %87 {offsets = [4, 0], sizes = [4, 128], strides = [1, 1]} : vector<8x128xf32> to vector<4x128xf32>
    %90 = vector.broadcast %68 : vector<1x128xf32> to vector<4x128xf32>
    %91 = arith.mulf %89, %90 : vector<4x128xf32>
    %92 = arith.mulf %88, %91 : vector<4x128xf32>
    %93 = vector.broadcast %69 : vector<1x128xf32> to vector<4x128xf32>
    %94 = arith.subf %93, %92 : vector<4x128xf32>
    %95 = vector.shape_cast %91 : vector<4x128xf32> to vector<4x1x128xf32>
    %96 = vector.broadcast %95 : vector<4x1x128xf32> to vector<4x16x128xf32>
    %97 = arith.mulf %67, %96 : vector<4x16x128xf32>
    %98 = vector.shape_cast %94 : vector<4x128xf32> to vector<4x1x128xf32>
    %99 = vector.broadcast %98 : vector<4x1x128xf32> to vector<4x16x128xf32>
    %100 = arith.addf %97, %99 : vector<4x16x128xf32>
    %101 = arith.negf %100 : vector<4x16x128xf32>
    %102 = math.exp %101 : vector<4x16x128xf32>
    %cst_37 = arith.constant 1.000000e+00 : f32
    %103 = vector.broadcast %cst_37 : f32 to vector<4x16x128xf32>
    %104 = arith.addf %103, %102 : vector<4x16x128xf32>
    %105 = arith.divf %103, %104 : vector<4x16x128xf32>
    %106 = arith.mulf %100, %105 : vector<4x16x128xf32>
    %c0_38 = arith.constant 0 : index
    %c0_39 = arith.constant 0 : index
    %c0_40 = arith.constant 0 : index
    %107 = vector.load %arg10[%c0_38, %c0_39, %c0_40] : memref<3x128x128xbf16, #tpu.memory_space<vmem>>, vector<3x128x128xbf16>
    %c0_41 = arith.constant 0 : index
    %c0_42 = arith.constant 0 : index
    %108 = vector.load %arg11[%c0_41, %c0_42] : memref<1x128xf32, #tpu.memory_space<vmem>>, vector<1x128xf32>
    %109 = arith.truncf %106 : vector<4x16x128xf32> to vector<4x16x128xbf16>
    %cst_43 = arith.constant 0.000000e+00 : bf16
    %110 = vector.broadcast %cst_43 : bf16 to vector<4x1x128xbf16>
    %111 = vector.extract_strided_slice %109 {offsets = [0, 0, 0], sizes = [4, 15, 128], strides = [1, 1, 1]} : vector<4x16x128xbf16> to vector<4x15x128xbf16>
    %112 = tpu.concatenate %110, %111 in 1 : vector<4x1x128xbf16>, vector<4x15x128xbf16> -> vector<4x16x128xbf16>
    %113 = vector.shape_cast %112 : vector<4x16x128xbf16> to vector<64x128xbf16>
    %114 = vector.extract_strided_slice %109 {offsets = [0, 1, 0], sizes = [4, 15, 128], strides = [1, 1, 1]} : vector<4x16x128xbf16> to vector<4x15x128xbf16>
    %115 = tpu.concatenate %114, %110 in 1 : vector<4x15x128xbf16>, vector<4x1x128xbf16> -> vector<4x16x128xbf16>
    %116 = vector.shape_cast %115 : vector<4x16x128xbf16> to vector<64x128xbf16>
    %117 = vector.shape_cast %109 : vector<4x16x128xbf16> to vector<64x128xbf16>
    %118 = vector.extract_strided_slice %107 {offsets = [0, 0, 0], sizes = [1, 128, 128], strides = [1, 1, 1]} : vector<3x128x128xbf16> to vector<1x128x128xbf16>
    %119 = vector.shape_cast %118 : vector<1x128x128xbf16> to vector<128x128xbf16>
    %cst_44 = arith.constant dense<0.000000e+00> : vector<64x128xf32>
    %120 = tpu.matmul %113, %119, %cst_44 {dimension_numbers = #tpu.dot_dimension_numbers<[1], [0], [0], [1], [0, 0, 1, 1], [], []>} : vector<64x128xbf16>, vector<128x128xbf16>, vector<64x128xf32> -> vector<64x128xf32>
    %121 = vector.extract_strided_slice %107 {offsets = [1, 0, 0], sizes = [1, 128, 128], strides = [1, 1, 1]} : vector<3x128x128xbf16> to vector<1x128x128xbf16>
    %122 = vector.shape_cast %121 : vector<1x128x128xbf16> to vector<128x128xbf16>
    %cst_45 = arith.constant dense<0.000000e+00> : vector<64x128xf32>
    %123 = tpu.matmul %117, %122, %cst_45 {dimension_numbers = #tpu.dot_dimension_numbers<[1], [0], [0], [1], [0, 0, 1, 1], [], []>} : vector<64x128xbf16>, vector<128x128xbf16>, vector<64x128xf32> -> vector<64x128xf32>
    %124 = arith.addf %120, %123 : vector<64x128xf32>
    %125 = vector.extract_strided_slice %107 {offsets = [2, 0, 0], sizes = [1, 128, 128], strides = [1, 1, 1]} : vector<3x128x128xbf16> to vector<1x128x128xbf16>
    %126 = vector.shape_cast %125 : vector<1x128x128xbf16> to vector<128x128xbf16>
    %cst_46 = arith.constant dense<0.000000e+00> : vector<64x128xf32>
    %127 = tpu.matmul %116, %126, %cst_46 {dimension_numbers = #tpu.dot_dimension_numbers<[1], [0], [0], [1], [0, 0, 1, 1], [], []>} : vector<64x128xbf16>, vector<128x128xbf16>, vector<64x128xf32> -> vector<64x128xf32>
    %128 = arith.addf %124, %127 : vector<64x128xf32>
    %129 = vector.broadcast %108 : vector<1x128xf32> to vector<64x128xf32>
    %130 = arith.addf %128, %129 : vector<64x128xf32>
    %131 = vector.shape_cast %130 : vector<64x128xf32> to vector<4x16x128xf32>
    %c0_47 = arith.constant 0 : index
    %c0_48 = arith.constant 0 : index
    %c0_49 = arith.constant 0 : index
    %132 = vector.load %arg1[%c0_47, %c0_48, %c0_49] : memref<4x16x128xbf16, #tpu.memory_space<vmem>>, vector<4x16x128xbf16>
    %133 = arith.extf %132 : vector<4x16x128xbf16> to vector<4x16x128xf32>
    %134 = arith.addf %133, %131 : vector<4x16x128xf32>
    %135 = arith.truncf %134 : vector<4x16x128xf32> to vector<4x16x128xbf16>
    %c0_50 = arith.constant 0 : index
    %c0_51 = arith.constant 0 : index
    %c0_52 = arith.constant 0 : index
    %136 = vector.load %arg12[%c0_50, %c0_51, %c0_52] : memref<4x16x128xbf16, #tpu.memory_space<vmem>>, vector<4x16x128xbf16>
    tpu.vector_store %arg12[%c0_50, %c0_51, %c0_52], %135 {strides = array<i32>} : memref<4x16x128xbf16, #tpu.memory_space<vmem>>, vector<4x16x128xbf16>,
    return
  }
  func.func @transform_0(%arg0: i32) -> (i32, i32, i32) {
    %c0_i32 = arith.constant 0 : i32
    %c0_i32_0 = arith.constant 0 : i32
    %c0_i32_1 = arith.constant 0 : i32
    return %arg0, %c0_i32, %c0_i32_0 : i32, i32, i32
  }
  func.func @transform_1(%arg0: i32) -> (i32, i32) {
    %c0_i32 = arith.constant 0 : i32
    %c0_i32_0 = arith.constant 0 : i32
    %c0_i32_1 = arith.constant 0 : i32
    return %c0_i32, %c0_i32_0 : i32, i32
  }
  func.func @transform_2(%arg0: i32) -> (i32, i32) {
    %c0_i32 = arith.constant 0 : i32
    %c0_i32_0 = arith.constant 0 : i32
    %c0_i32_1 = arith.constant 0 : i32
    return %c0_i32, %c0_i32_0 : i32, i32
  }
  func.func @transform_3(%arg0: i32) -> (i32, i32) {
    %c0_i32 = arith.constant 0 : i32
    %c0_i32_0 = arith.constant 0 : i32
    %c0_i32_1 = arith.constant 0 : i32
    return %c0_i32, %c0_i32_0 : i32, i32
  }
  func.func @transform_4(%arg0: i32) -> (i32, i32) {
    %c0_i32 = arith.constant 0 : i32
    %c0_i32_0 = arith.constant 0 : i32
    %c0_i32_1 = arith.constant 0 : i32
    return %c0_i32, %c0_i32_0 : i32, i32
  }
  func.func @transform_5(%arg0: i32) -> (i32, i32, i32) {
    %c0_i32 = arith.constant 0 : i32
    %c0_i32_0 = arith.constant 0 : i32
    %c0_i32_1 = arith.constant 0 : i32
    %c0_i32_2 = arith.constant 0 : i32
    return %c0_i32, %c0_i32_0, %c0_i32_1 : i32, i32, i32
  }
  func.func @transform_6(%arg0: i32) -> (i32, i32) {
    %c0_i32 = arith.constant 0 : i32
    %c0_i32_0 = arith.constant 0 : i32
    %c0_i32_1 = arith.constant 0 : i32
    return %c0_i32, %c0_i32_0 : i32, i32
  }
  func.func @transform_7(%arg0: i32) -> (i32, i32) {
    %c0_i32 = arith.constant 0 : i32
    %c0_i32_0 = arith.constant 0 : i32
    %c0_i32_1 = arith.constant 0 : i32
    return %c0_i32, %c0_i32_0 : i32, i32
  }
  func.func @transform_8(%arg0: i32) -> (i32, i32) {
    %c0_i32 = arith.constant 0 : i32
    %c0_i32_0 = arith.constant 0 : i32
    %c0_i32_1 = arith.constant 0 : i32
    return %c0_i32, %c0_i32_0 : i32, i32
  }
  func.func @transform_9(%arg0: i32) -> (i32, i32, i32) {
    %c0_i32 = arith.constant 0 : i32
    %c0_i32_0 = arith.constant 0 : i32
    %c0_i32_1 = arith.constant 0 : i32
    %c0_i32_2 = arith.constant 0 : i32
    return %c0_i32, %c0_i32_0, %c0_i32_1 : i32, i32, i32
  }
  func.func @transform_10(%arg0: i32) -> (i32, i32) {
    %c0_i32 = arith.constant 0 : i32
    %c0_i32_0 = arith.constant 0 : i32
    %c0_i32_1 = arith.constant 0 : i32
    return %c0_i32, %c0_i32_0 : i32, i32
  }
  func.func @transform_11(%arg0: i32) -> (i32, i32, i32) {
    %c0_i32 = arith.constant 0 : i32
    %c0_i32_0 = arith.constant 0 : i32
    %c0_i32_1 = arith.constant 0 : i32
    return %arg0, %c0_i32, %c0_i32_0 : i32, i32, i32
  }
}

</mosaic_0001>

<llo_original>
// kernel: resnet_block_forward.1
$region0: #{resnet_block_forward.1}
  #allocation0 [shape = 'u32[]', space=smem, size = 0x4, offset = 0x4, fixed_abs, tag = 'smem constant byte address 0x4 - core index']
  #allocation1 [shape = 'u32[144,128]{1,0:T(1,128)}', space=vmem, size = 0x12000, scoped, tag = 'internal scratch']
  %s0 = inlined_call_operand.vmem [shape: bf16[4,16,128], index: 0, kind: input, shape index: {}]
  %s1 = inlined_call_operand.vmem [shape: f32[32,128], index: 1, kind: input, shape index: {}]
  %s2 = inlined_call_operand.vmem [shape: f32[128,32], index: 2, kind: input, shape index: {}]
  %s3 = inlined_call_operand.vmem [shape: f32[1,128], index: 3, kind: input, shape index: {}]
  %s4 = inlined_call_operand.vmem [shape: f32[1,128], index: 4, kind: input, shape index: {}]
  %s5 = inlined_call_operand.hbm [shape: bf16[3,128,128], index: 5, kind: input, shape index: {}]
  %s6 = inlined_call_operand.vmem [shape: f32[1,128], index: 6, kind: input, shape index: {}]
  %s7 = inlined_call_operand.vmem [shape: f32[1,128], index: 7, kind: input, shape index: {}]
  %s8 = inlined_call_operand.vmem [shape: f32[1,128], index: 8, kind: input, shape index: {}]
  %s9 = inlined_call_operand.hbm [shape: bf16[3,128,128], index: 9, kind: input, shape index: {}]
  %s10 = inlined_call_operand.vmem [shape: f32[1,128], index: 10, kind: input, shape index: {}]
  %s11 = inlined_call_operand.hbm [shape: bf16[4,16,128], index: 11, kind: output, shape index: {}]
  %s12 = sld [smem:[#allocation0]]
  $region62: #{resnet_block_forward.1} parent=0
    _
  %s14 = ssub.s32 1, %s12
  %s15 = scalar_select 0, %s14, %s12
  $region1: #{resnet_block_forward.1} parent=0
    #allocation2 [shape = 'u8[98304]{0}', space=vmem, size = 0x18000, scoped, tag = 'input window, operand 5, single buffered']
    #allocation3 [shape = 's32[1]{0}', space=sflag, size = 0x4, scoped, tag = 'scoped memory for resnet_block_forward.1']
    #allocation4 [shape = 's32[1]{0}', space=sflag, size = 0x4, scoped, tag = 'scoped memory for resnet_block_forward.1']
    #allocation5 [shape = 'u8[98304]{0}', space=vmem, size = 0x18000, scoped, tag = 'input window, operand 9, single buffered']
    #allocation6 [shape = 's32[1]{0}', space=sflag, size = 0x4, scoped, tag = 'scoped memory for resnet_block_forward.1']
    #allocation7 [shape = 'u8[16384]{0}', space=vmem, size = 0x4000, scoped, tag = 'output window, operand 0, single buffered']
    %16 = vsyncpa [#allocation3], 0
    %17 = vsyncpa [#allocation6], 0
    %18 = vsyncpa [#allocation4], 0
    // Predicated region
    $region2: #{resnet_block_forward.1} parent=1 // pred_check
      _
    $region3: #{resnet_block_forward.1} parent=1 // pred_check_branch
      %20 = sbr.rel (0) target = $region5
    $region4: #{resnet_block_forward.1} parent=1 // pred_region
      _
    $region5: #{resnet_block_forward.1} parent=1 // pred_fallthru
      _
    // Predicated region
    $region6: #{resnet_block_forward.1} parent=1 // pred_check
      _
    $region7: #{resnet_block_forward.1} parent=1 // pred_check_branch
      %22 = sbr.rel (0) target = $region9
    $region8: #{resnet_block_forward.1} parent=1 // pred_region
      _
    $region9: #{resnet_block_forward.1} parent=1 // pred_fallthru
      _
    // Predicated region
    $region10: #{resnet_block_forward.1} parent=1 // pred_check
      _
    $region11: #{resnet_block_forward.1} parent=1 // pred_check_branch
      %24 = sbr.rel (0) target = $region13
    $region12: #{resnet_block_forward.1} parent=1 // pred_region
      _
    $region13: #{resnet_block_forward.1} parent=1 // pred_fallthru
      _
    // Predicated region
    $region14: #{resnet_block_forward.1} parent=1 // pred_check
      _
    $region15: #{resnet_block_forward.1} parent=1 // pred_check_branch
      %26 = sbr.rel (0) target = $region17
    $region16: #{resnet_block_forward.1} parent=1 // pred_region
      _
    $region17: #{resnet_block_forward.1} parent=1 // pred_fallthru
      _
    // Predicated region
    $region18: #{resnet_block_forward.1} parent=1 // pred_check
      _
    $region19: #{resnet_block_forward.1} parent=1 // pred_check_branch
      %28 = sbr.rel (0) target = $region21
    $region20: #{resnet_block_forward.1} parent=1 // pred_region
      _
    $region21: #{resnet_block_forward.1} parent=1 // pred_fallthru
      _
    // Predicated region
    $region22: #{resnet_block_forward.1} parent=1 // pred_check
      _
    $region23: #{resnet_block_forward.1} parent=1 // pred_check_branch
      %30 = sbr.rel (0) target = $region25
    $region24: #{resnet_block_forward.1} parent=1 // pred_region
      %s32 = ssub.s32 3072, 3072
      %33 = vsyncadd [#allocation3], %s32
      %s34 = sshll.u32 [#allocation2], 4
      %s35 = int_to_ptr.vmem [resolvable:$true] %s34
      %40 = dma.hbm_to_vmem [thread:$0]  %s5, 3072, %s35, [#allocation3], 64, 64, 4
    $region25: #{resnet_block_forward.1} parent=1 // pred_fallthru
      _
    // Predicated region
    $region26: #{resnet_block_forward.1} parent=1 // pred_check
      _
    $region27: #{resnet_block_forward.1} parent=1 // pred_check_branch
      %42 = sbr.rel (0) target = $region29
    $region28: #{resnet_block_forward.1} parent=1 // pred_region
      _
    $region29: #{resnet_block_forward.1} parent=1 // pred_fallthru
      _
    // Predicated region
    $region30: #{resnet_block_forward.1} parent=1 // pred_check
      _
    $region31: #{resnet_block_forward.1} parent=1 // pred_check_branch
      %44 = sbr.rel (0) target = $region33
    $region32: #{resnet_block_forward.1} parent=1 // pred_region
      _
    $region33: #{resnet_block_forward.1} parent=1 // pred_fallthru
      _
    // Predicated region
    $region34: #{resnet_block_forward.1} parent=1 // pred_check
      _
    $region35: #{resnet_block_forward.1} parent=1 // pred_check_branch
      %46 = sbr.rel (0) target = $region37
    $region36: #{resnet_block_forward.1} parent=1 // pred_region
      _
    $region37: #{resnet_block_forward.1} parent=1 // pred_fallthru
      _
    // Predicated region
    $region38: #{resnet_block_forward.1} parent=1 // pred_check
      _
    $region39: #{resnet_block_forward.1} parent=1 // pred_check_branch
      %48 = sbr.rel (0) target = $region41
    $region40: #{resnet_block_forward.1} parent=1 // pred_region
      %s50 = ssub.s32 3072, 3072
      %51 = vsyncadd [#allocation6], %s50
      %s52 = sshll.u32 [#allocation5], 4
      %s53 = int_to_ptr.vmem [resolvable:$true] %s52
      %58 = dma.hbm_to_vmem [thread:$0]  %s9, 3072, %s53, [#allocation6], 64, 64, 4
    $region41: #{resnet_block_forward.1} parent=1 // pred_fallthru
      _
    // Predicated region
    $region42: #{resnet_block_forward.1} parent=1 // pred_check
      _
    $region43: #{resnet_block_forward.1} parent=1 // pred_check_branch
      %60 = sbr.rel (0) target = $region45
    $region44: #{resnet_block_forward.1} parent=1 // pred_region
      _
    $region45: #{resnet_block_forward.1} parent=1 // pred_fallthru
      _
    // Predicated region
    $region46: #{resnet_block_forward.1} parent=1 // pred_check
      _
    $region47: #{resnet_block_forward.1} parent=1 // pred_check_branch
      %62 = sbr.rel (0) target = $region49
    $region48: #{resnet_block_forward.1} parent=1 // pred_region
      %63 = dma.done [#allocation3], 3072
    $region49: #{resnet_block_forward.1} parent=1 // pred_fallthru
      _
    // Predicated region
    $region50: #{resnet_block_forward.1} parent=1 // pred_check
      _
    $region51: #{resnet_block_forward.1} parent=1 // pred_check_branch
      %65 = sbr.rel (0) target = $region53
    $region52: #{resnet_block_forward.1} parent=1 // pred_region
      %66 = dma.done [#allocation6], 3072
    $region53: #{resnet_block_forward.1} parent=1 // pred_fallthru
      _
    %v68 = vld [vmem:[%s1] sm:$0xff]
    %v69 = vld [vmem:[%s1 + $0x8] sm:$0xff]
    %v70 = vld [vmem:[%s1 + $0x10] sm:$0xff]
    %v71 = vld [vmem:[%s1 + $0x18] sm:$0xff]
    %v72 = vld [vmem:[%s2] sm:$0xff]
    %v73 = vld [vmem:[%s2 + $0x8] sm:$0xff]
    %v74 = vld [vmem:[%s2 + $0x10] sm:$0xff]
    %v75 = vld [vmem:[%s2 + $0x18] sm:$0xff]
    %v76 = vld [vmem:[%s2 + $0x20] sm:$0xff]
    %v77 = vld [vmem:[%s2 + $0x28] sm:$0xff]
    %v78 = vld [vmem:[%s2 + $0x30] sm:$0xff]
    %v79 = vld [vmem:[%s2 + $0x38] sm:$0xff]
    %v80 = vld [vmem:[%s2 + $0x40] sm:$0xff]
    %v81 = vld [vmem:[%s2 + $0x48] sm:$0xff]
    %v82 = vld [vmem:[%s2 + $0x50] sm:$0xff]
    %v83 = vld [vmem:[%s2 + $0x58] sm:$0xff]
    %v84 = vld [vmem:[%s2 + $0x60] sm:$0xff]
    %v85 = vld [vmem:[%s2 + $0x68] sm:$0xff]
    %v86 = vld [vmem:[%s2 + $0x70] sm:$0xff]
    %v87 = vld [vmem:[%s2 + $0x78] sm:$0xff]
    %v88 = vld [vmem:[%s0] sm:$0xf]
    %v89 = vld [vmem:[%s0 + $0x4] sm:$0xf]
    %v90 = vld [vmem:[%s0 + $0x8] sm:$0xf]
    %v91 = vld [vmem:[%s0 + $0xc] sm:$0xf]
    %v92 = vld [vmem:[%s0 + $0x10] sm:$0xf]
    %v93 = vld [vmem:[%s0 + $0x14] sm:$0xf]
    %v94 = vld [vmem:[%s0 + $0x18] sm:$0xf]
    %v95 = vld [vmem:[%s0 + $0x1c] sm:$0xf]
    %v96 = vunpack.c.l.bf16 %v88
    %v97 = vunpack.c.l.bf16 %v89
    %v98 = vunpack.c.l.bf16 %v90
    %v99 = vunpack.c.l.bf16 %v91
    %v100 = vunpack.c.l.bf16 %v92
    %v101 = vunpack.c.l.bf16 %v93
    %v102 = vunpack.c.l.bf16 %v94
    %v103 = vunpack.c.l.bf16 %v95
    %v104 = vld [vmem:[%s3] sm:$0x1]
    %v105 = vld [vmem:[%s4] sm:$0x1]
    %v106 = vadd.f32 %v96, %v97
    %v107 = vrot.slane %v106, 4
    %v108 = vadd.f32 %v106, %v107
    %v109 = vrot.slane %v108, 2
    %v110 = vadd.f32 %v108, %v109
    %v111 = vrot.slane %v110, 1
    %v112 = vadd.f32 %v110, %v111
    %v113 = vadd.f32 %v98, %v99
    %v114 = vrot.slane %v113, 4
    %v115 = vadd.f32 %v113, %v114
    %v116 = vrot.slane %v115, 2
    %v117 = vadd.f32 %v115, %v116
    %v118 = vrot.slane %v117, 1
    %v119 = vadd.f32 %v117, %v118
    %v120 = vadd.f32 %v100, %v101
    %v121 = vrot.slane %v120, 4
    %v122 = vadd.f32 %v120, %v121
    %v123 = vrot.slane %v122, 2
    %v124 = vadd.f32 %v122, %v123
    %v125 = vrot.slane %v124, 1
    %v126 = vadd.f32 %v124, %v125
    %v127 = vadd.f32 %v102, %v103
    %v128 = vrot.slane %v127, 4
    %v129 = vadd.f32 %v127, %v128
    %v130 = vrot.slane %v129, 2
    %v131 = vadd.f32 %v129, %v130
    %v132 = vrot.slane %v131, 1
    %v133 = vadd.f32 %v131, %v132
    %v134 = vmul.f32 %v96, %v96
    %v135 = vmul.f32 %v97, %v97
    %v136 = vmul.f32 %v98, %v98
    %v137 = vmul.f32 %v99, %v99
    %v138 = vmul.f32 %v100, %v100
    %v139 = vmul.f32 %v101, %v101
    %v140 = vmul.f32 %v102, %v102
    %v141 = vmul.f32 %v103, %v103
    %v142 = vadd.f32 %v134, %v135
    %v143 = vrot.slane %v142, 4
    %v144 = vadd.f32 %v142, %v143
    %v145 = vrot.slane %v144, 2
    %v146 = vadd.f32 %v144, %v145
    %v147 = vrot.slane %v146, 1
    %v148 = vadd.f32 %v146, %v147
    %v149 = vadd.f32 %v136, %v137
    %v150 = vrot.slane %v149, 4
    %v151 = vadd.f32 %v149, %v150
    %v152 = vrot.slane %v151, 2
    %v153 = vadd.f32 %v151, %v152
    %v154 = vrot.slane %v153, 1
    %v155 = vadd.f32 %v153, %v154
    %v156 = vadd.f32 %v138, %v139
    %v157 = vrot.slane %v156, 4
    %v158 = vadd.f32 %v156, %v157
    %v159 = vrot.slane %v158, 2
    %v160 = vadd.f32 %v158, %v159
    %v161 = vrot.slane %v160, 1
    %v162 = vadd.f32 %v160, %v161
    %v163 = vadd.f32 %v140, %v141
    %v164 = vrot.slane %v163, 4
    %v165 = vadd.f32 %v163, %v164
    %v166 = vrot.slane %v165, 2
    %v167 = vadd.f32 %v165, %v166
    %v168 = vrot.slane %v167, 1
    %v169 = vadd.f32 %v167, %v168
    %vm174 = vcmask 1041409
    %v175 = vsel %vm174, %v119, %v112
    %vm176 = vcmask 1042434
    %v177 = vsel %vm176, %v126, %v175
    %vm178 = vcmask 1043459
    %v179 = vsel %vm178, %v133, %v177
    %vm185 = vcmask 1045509
    %v186 = vsel %vm185, %v155, %v148
    %vm187 = vcmask 1046534
    %v188 = vsel %vm187, %v162, %v186
    %vm189 = vcmask 1047559
    %v190 = vsel %vm189, %v169, %v188
    %vm192 = vcmask 1043456
    %v193 = vsel %vm192, %v179, %v190
    %194 = vmatprep.subr.mxu0 0.0
    %195 = vmatpush1.msra.mxu0 %v87
    %196 = vmatprep.subr.mxu0 0.0
    %197 = vmatpush1.msra.mxu0 %v86
    %198 = vmatprep.subr.mxu0 0.0
    %199 = vmatpush1.msra.mxu0 %v85
    %200 = vmatprep.subr.mxu0 0.0
    %201 = vmatpush1.msra.mxu0 %v84
    %202 = vmatprep.subr.mxu0 0.0
    %203 = vmatpush1.msra.mxu0 %v83
    %204 = vmatprep.subr.mxu0 0.0
    %205 = vmatpush1.msra.mxu0 %v82
    %206 = vmatprep.subr.mxu0 0.0
    %207 = vmatpush1.msra.mxu0 %v81
    %208 = vmatprep.subr.mxu0 0.0
    %209 = vmatpush1.msra.mxu0 %v80
    %210 = vmatprep.subr.mxu0 0.0
    %211 = vmatpush1.msra.mxu0 %v79
    %212 = vmatprep.subr.mxu0 0.0
    %213 = vmatpush1.msra.mxu0 %v78
    %214 = vmatprep.subr.mxu0 0.0
    %215 = vmatpush1.msra.mxu0 %v77
    %216 = vmatprep.subr.mxu0 0.0
    %217 = vmatpush1.msra.mxu0 %v76
    %218 = vmatprep.subr.mxu0 0.0
    %219 = vmatpush1.msra.mxu0 %v75
    %220 = vmatprep.subr.mxu0 0.0
    %221 = vmatpush1.msra.mxu0 %v74
    %222 = vmatprep.subr.mxu0 0.0
    %223 = vmatpush1.msra.mxu0 %v73
    %224 = vmatprep.subr.mxu0 0.0
    %225 = vmatpush1.msra.mxu0 %v72
    %226 = vmatprep.subr.mxu0 0.0
    %227 = vmatpush2.msra.mxu0 0.0
    %228 = vmatprep.subr.mxu0 0.0
    %229 = vmatpush2.msra.mxu0 0.0
    %230 = vmatprep.subr.mxu0 0.0
    %231 = vmatpush2.msra.mxu0 0.0
    %232 = vmatprep.subr.mxu0 0.0
    %233 = vmatpush2.msra.mxu0 0.0
    %234 = vmatprep.subr.mxu0 0.0
    %235 = vmatpush2.msra.mxu0 0.0
    %236 = vmatprep.subr.mxu0 0.0
    %237 = vmatpush2.msra.mxu0 0.0
    %238 = vmatprep.subr.mxu0 0.0
    %239 = vmatpush2.msra.mxu0 0.0
    %240 = vmatprep.subr.mxu0 0.0
    %241 = vmatpush2.msra.mxu0 0.0
    %242 = vmatprep.subr.mxu0 0.0
    %243 = vmatpush2.msra.mxu0 0.0
    %244 = vmatprep.subr.mxu0 0.0
    %245 = vmatpush2.msra.mxu0 0.0
    %246 = vmatprep.subr.mxu0 0.0
    %247 = vmatpush2.msra.mxu0 0.0
    %248 = vmatprep.subr.mxu0 0.0
    %249 = vmatpush2.msra.mxu0 0.0
    %250 = vmatprep.subr.mxu0 0.0
    %251 = vmatpush2.msra.mxu0 0.0
    %252 = vmatprep.subr.mxu0 0.0
    %253 = vmatpush2.msra.mxu0 0.0
    %254 = vmatprep.subr.mxu0 0.0
    %255 = vmatpush2.msra.mxu0 0.0
    %256 = vmatprep.subr.mxu0 0.0
    %257 = vmatpush2.msra.mxu0 0.0
    %258 = vmatprep.mubr.f32.mxu0 0.0
    %259 = vmatmul.mubr.f32.gmra.mxu0 %v193
    %v260 = vpop.f32.mrf.mxu0
    %v261 = vadd.f32 0.0, %v260
    %v262 = vpop.f32.mrf.mxu0
    %263 = vdwg.mxu0
    %v264 = vmul.f32 %v261, 0.015625
    %v265 = vmul.f32 %v264, %v264
    %v267 = vrot.slane %v265, 4
    %v269 = vsub.f32 %v264, %v267
    %v270 = vadd.f32 %v269, 1e-06
    %v271 = vrsqrt.pop %v270
    %v272 = vsel %vm192, %v264, %v271
    %vm273 = vcmask 261120
    %v275 = vsel %vm273, %v272, 0
    %277 = vmatprep.subr.mxu0 0.0
    %278 = vmatpush1.msra.mxu0 0.0
    %279 = vmatprep.subr.mxu0 0.0
    %280 = vmatpush1.msra.mxu0 0.0
    %281 = vmatprep.subr.mxu0 0.0
    %282 = vmatpush1.msra.mxu0 0.0
    %283 = vmatprep.subr.mxu0 0.0
    %284 = vmatpush1.msra.mxu0 0.0
    %285 = vmatprep.subr.mxu0 0.0
    %286 = vmatpush1.msra.mxu0 0.0
    %287 = vmatprep.subr.mxu0 0.0
    %288 = vmatpush1.msra.mxu0 0.0
    %289 = vmatprep.subr.mxu0 0.0
    %290 = vmatpush1.msra.mxu0 0.0
    %291 = vmatprep.subr.mxu0 0.0
    %292 = vmatpush1.msra.mxu0 0.0
    %293 = vmatprep.subr.mxu0 0.0
    %294 = vmatpush1.msra.mxu0 0.0
    %295 = vmatprep.subr.mxu0 0.0
    %296 = vmatpush1.msra.mxu0 0.0
    %297 = vmatprep.subr.mxu0 0.0
    %298 = vmatpush1.msra.mxu0 0.0
    %299 = vmatprep.subr.mxu0 0.0
    %300 = vmatpush1.msra.mxu0 0.0
    %301 = vmatprep.subr.mxu0 0.0
    %302 = vmatpush1.msra.mxu0 %v71
    %303 = vmatprep.subr.mxu0 0.0
    %304 = vmatpush1.msra.mxu0 %v70
    %305 = vmatprep.subr.mxu0 0.0
    %306 = vmatpush1.msra.mxu0 %v69
    %307 = vmatprep.subr.mxu0 0.0
    %308 = vmatpush1.msra.mxu0 %v68
    %309 = vmatprep.subr.mxu0 0.0
    %310 = vmatpush2.msra.mxu0 0.0
    %311 = vmatprep.subr.mxu0 0.0
    %312 = vmatpush2.msra.mxu0 0.0
    %313 = vmatprep.subr.mxu0 0.0
    %314 = vmatpush2.msra.mxu0 0.0
    %315 = vmatprep.subr.mxu0 0.0
    %316 = vmatpush2.msra.mxu0 0.0
    %317 = vmatprep.subr.mxu0 0.0
    %318 = vmatpush2.msra.mxu0 0.0
    %319 = vmatprep.subr.mxu0 0.0
    %320 = vmatpush2.msra.mxu0 0.0
    %321 = vmatprep.subr.mxu0 0.0
    %322 = vmatpush2.msra.mxu0 0.0
    %323 = vmatprep.subr.mxu0 0.0
    %324 = vmatpush2.msra.mxu0 0.0
    %325 = vmatprep.subr.mxu0 0.0
    %326 = vmatpush2.msra.mxu0 0.0
    %327 = vmatprep.subr.mxu0 0.0
    %328 = vmatpush2.msra.mxu0 0.0
    %329 = vmatprep.subr.mxu0 0.0
    %330 = vmatpush2.msra.mxu0 0.0
    %331 = vmatprep.subr.mxu0 0.0
    %332 = vmatpush2.msra.mxu0 0.0
    %333 = vmatprep.subr.mxu0 0.0
    %334 = vmatpush2.msra.mxu0 0.0
    %335 = vmatprep.subr.mxu0 0.0
    %336 = vmatpush2.msra.mxu0 0.0
    %337 = vmatprep.subr.mxu0 0.0
    %338 = vmatpush2.msra.mxu0 0.0
    %339 = vmatprep.subr.mxu0 0.0
    %340 = vmatpush2.msra.mxu0 0.0
    %341 = vmatprep.mubr.f32.mxu0 0.0
    %342 = vmatmul.mubr.f32.gmra.mxu0 %v275
    %v343 = vpop.f32.mrf.mxu0
    %v344 = vadd.f32 0.0, %v343
    %v345 = vpop.f32.mrf.mxu0
    %346 = vdwg.mxu0
    %v348 = vlaneseq
    %v349 = vshrl.u32 %v348, 7
    %v350 = vsub.s32 0, %v349
    %v351 = vrot.slane %v104, %v350
    %v353 = vmul.f32 %v344, %v351
    %v355 = vrot.slane %v353, 4
    %v357 = vmul.f32 %v344, %v355
    %v359 = vlaneseq
    %v360 = vshrl.u32 %v359, 7
    %v361 = vsub.s32 0, %v360
    %v362 = vrot.slane %v105, %v361
    %v364 = vsub.f32 %v362, %v357
    %v365 = vcombine.high %v353, %v353
    %v367 = vunpack.c.l.s4 1966171168
    %v368 = vunpack.c.0.s8 %v367
    %v369 = vlaneseq
    %v370 = vshrl.u32 %v369, 7
    %v371 = vsub.s32 %v368, %v370
    %v372 = vrot.slane %v365, %v371
    %v373 = vcombine.high %v372, %v372
    %v375 = vunpack.c.l.s4 1966171168
    %v376 = vunpack.c.0.s8 %v375
    %v377 = vlaneseq
    %v378 = vshrl.u32 %v377, 7
    %v379 = vsub.s32 %v376, %v378
    %v380 = vrot.slane %v372, %v379
    %v382 = vunpack.c.l.s4 1966171168
    %v383 = vunpack.c.0.s8 %v382
    %v384 = vlaneseq
    %v385 = vshrl.u32 %v384, 7
    %v386 = vsub.s32 %v383, %v385
    %v387 = vrot.slane %v373, %v386
    %v388 = vcombine.high %v380, %v380
    %v389 = vcombine.high %v387, %v387
    %v390 = vlaneseq
    %v391 = vshrl.u32 %v390, 7
    %v392 = vsub.s32 0, %v391
    %v393 = vrot.slane %v380, %v392
    %v394 = vlaneseq
    %v395 = vshrl.u32 %v394, 7
    %v396 = vsub.s32 0, %v395
    %v397 = vrot.slane %v387, %v396
    %v398 = vlaneseq
    %v399 = vshrl.u32 %v398, 7
    %v400 = vsub.s32 0, %v399
    %v401 = vrot.slane %v388, %v400
    %v402 = vlaneseq
    %v403 = vshrl.u32 %v402, 7
    %v404 = vsub.s32 0, %v403
    %v405 = vrot.slane %v389, %v404
    %v410 = vmul.f32 %v96, %v393
    %v411 = vmul.f32 %v97, %v393
    %v412 = vmul.f32 %v98, %v397
    %v413 = vmul.f32 %v99, %v397
    %v414 = vmul.f32 %v100, %v401
    %v415 = vmul.f32 %v101, %v401
    %v416 = vmul.f32 %v102, %v405
    %v417 = vmul.f32 %v103, %v405
    %v420 = vunpack.c.l.s4 1966171168
    %v421 = vunpack.c.0.s8 %v420
    %v422 = vlaneseq
    %v423 = vshrl.u32 %v422, 7
    %v424 = vsub.s32 %v421, %v423
    %v425 = vrot.slane %v364, %v424
    %v426 = vcombine.high %v425, %v425
    %v428 = vunpack.c.l.s4 1966171168
    %v429 = vunpack.c.0.s8 %v428
    %v430 = vlaneseq
    %v431 = vshrl.u32 %v430, 7
    %v432 = vsub.s32 %v429, %v431
    %v433 = vrot.slane %v425, %v432
    %v435 = vunpack.c.l.s4 1966171168
    %v436 = vunpack.c.0.s8 %v435
    %v437 = vlaneseq
    %v438 = vshrl.u32 %v437, 7
    %v439 = vsub.s32 %v436, %v438
    %v440 = vrot.slane %v426, %v439
    %v441 = vcombine.high %v433, %v433
    %v442 = vcombine.high %v440, %v440
    %v443 = vlaneseq
    %v444 = vshrl.u32 %v443, 7
    %v445 = vsub.s32 0, %v444
    %v446 = vrot.slane %v433, %v445
    %v447 = vlaneseq
    %v448 = vshrl.u32 %v447, 7
    %v449 = vsub.s32 0, %v448
    %v450 = vrot.slane %v440, %v449
    %v451 = vlaneseq
    %v452 = vshrl.u32 %v451, 7
    %v453 = vsub.s32 0, %v452
    %v454 = vrot.slane %v441, %v453
    %v455 = vlaneseq
    %v456 = vshrl.u32 %v455, 7
    %v457 = vsub.s32 0, %v456
    %v458 = vrot.slane %v442, %v457
    %v463 = vadd.f32 %v410, %v446
    %v464 = vadd.f32 %v411, %v446
    %v465 = vadd.f32 %v412, %v450
    %v466 = vadd.f32 %v413, %v450
    %v467 = vadd.f32 %v414, %v454
    %v468 = vadd.f32 %v415, %v454
    %v469 = vadd.f32 %v416, %v458
    %v470 = vadd.f32 %v417, %v458
    %v471 = vxor.u32 %v463, 2147483648
    %v472 = vxor.u32 %v464, 2147483648
    %v473 = vxor.u32 %v465, 2147483648
    %v474 = vxor.u32 %v466, 2147483648
    %v475 = vxor.u32 %v467, 2147483648
    %v476 = vxor.u32 %v468, 2147483648
    %v477 = vxor.u32 %v469, 2147483648
    %v478 = vxor.u32 %v470, 2147483648
    %v479 = vmul.f32 %v471, 1.442695
    %v480 = vpow.pop %v479
    %v481 = vmul.f32 %v472, 1.442695
    %v482 = vpow.pop %v481
    %v483 = vmul.f32 %v473, 1.442695
    %v484 = vpow.pop %v483
    %v485 = vmul.f32 %v474, 1.442695
    %v486 = vpow.pop %v485
    %v487 = vmul.f32 %v475, 1.442695
    %v488 = vpow.pop %v487
    %v489 = vmul.f32 %v476, 1.442695
    %v490 = vpow.pop %v489
    %v491 = vmul.f32 %v477, 1.442695
    %v492 = vpow.pop %v491
    %v493 = vmul.f32 %v478, 1.442695
    %v494 = vpow.pop %v493
    %v495 = vadd.f32 %v480, 1.0
    %v496 = vadd.f32 %v482, 1.0
    %v497 = vadd.f32 %v484, 1.0
    %v498 = vadd.f32 %v486, 1.0
    %v499 = vadd.f32 %v488, 1.0
    %v500 = vadd.f32 %v490, 1.0
    %v501 = vadd.f32 %v492, 1.0
    %v502 = vadd.f32 %v494, 1.0
    %v503 = vrcp.pop %v495
    %v504 = vmul.f32 1.0, %v503
    %v505 = vrcp.pop %v496
    %v506 = vmul.f32 1.0, %v505
    %v507 = vrcp.pop %v497
    %v508 = vmul.f32 1.0, %v507
    %v509 = vrcp.pop %v498
    %v510 = vmul.f32 1.0, %v509
    %v511 = vrcp.pop %v499
    %v512 = vmul.f32 1.0, %v511
    %v513 = vrcp.pop %v500
    %v514 = vmul.f32 1.0, %v513
    %v515 = vrcp.pop %v501
    %v516 = vmul.f32 1.0, %v515
    %v517 = vrcp.pop %v502
    %v518 = vmul.f32 1.0, %v517
    %v519 = vmul.f32 %v463, %v504
    %v520 = vmul.f32 %v464, %v506
    %v521 = vmul.f32 %v465, %v508
    %v522 = vmul.f32 %v466, %v510
    %v523 = vmul.f32 %v467, %v512
    %v524 = vmul.f32 %v468, %v514
    %v525 = vmul.f32 %v469, %v516
    %v526 = vmul.f32 %v470, %v518
    %v527 = vld [vmem:[#allocation2] sm:$0xf]
    %v528 = vld [vmem:[#allocation2 + $0x4] sm:$0xf]
    %v529 = vld [vmem:[#allocation2 + $0x8] sm:$0xf]
    %v530 = vld [vmem:[#allocation2 + $0xc] sm:$0xf]
    %v531 = vld [vmem:[#allocation2 + $0x10] sm:$0xf]
    %v532 = vld [vmem:[#allocation2 + $0x14] sm:$0xf]
    %v533 = vld [vmem:[#allocation2 + $0x18] sm:$0xf]
    %v534 = vld [vmem:[#allocation2 + $0x1c] sm:$0xf]
    %v535 = vld [vmem:[#allocation2 + $0x20] sm:$0xf]
    %v536 = vld [vmem:[#allocation2 + $0x24] sm:$0xf]
    %v537 = vld [vmem:[#allocation2 + $0x28] sm:$0xf]
    %v538 = vld [vmem:[#allocation2 + $0x2c] sm:$0xf]
    %v539 = vld [vmem:[#allocation2 + $0x30] sm:$0xf]
    %v540 = vld [vmem:[#allocation2 + $0x34] sm:$0xf]
    %v541 = vld [vmem:[#allocation2 + $0x38] sm:$0xf]
    %v542 = vld [vmem:[#allocation2 + $0x3c] sm:$0xf]
    %v543 = vld [vmem:[#allocation2 + $0x40] sm:$0xf]
    %v544 = vld [vmem:[#allocation2 + $0x44] sm:$0xf]
    %v545 = vld [vmem:[#allocation2 + $0x48] sm:$0xf]
    %v546 = vld [vmem:[#allocation2 + $0x4c] sm:$0xf]
    %v547 = vld [vmem:[#allocation2 + $0x50] sm:$0xf]
    %v548 = vld [vmem:[#allocation2 + $0x54] sm:$0xf]
    %v549 = vld [vmem:[#allocation2 + $0x58] sm:$0xf]
    %v550 = vld [vmem:[#allocation2 + $0x5c] sm:$0xf]
    %v551 = vld [vmem:[#allocation2 + $0x60] sm:$0xf]
    %v552 = vld [vmem:[#allocation2 + $0x64] sm:$0xf]
    %v553 = vld [vmem:[#allocation2 + $0x68] sm:$0xf]
    %v554 = vld [vmem:[#allocation2 + $0x6c] sm:$0xf]
    %v555 = vld [vmem:[#allocation2 + $0x70] sm:$0xf]
    %v556 = vld [vmem:[#allocation2 + $0x74] sm:$0xf]
    %v557 = vld [vmem:[#allocation2 + $0x78] sm:$0xf]
    %v558 = vld [vmem:[#allocation2 + $0x7c] sm:$0xf]
    %v559 = vld [vmem:[#allocation2 + $0x80] sm:$0xf]
    %v560 = vld [vmem:[#allocation2 + $0x84] sm:$0xf]
    %v561 = vld [vmem:[#allocation2 + $0x88] sm:$0xf]
    %v562 = vld [vmem:[#allocation2 + $0x8c] sm:$0xf]
    %v563 = vld [vmem:[#allocation2 + $0x90] sm:$0xf]
    %v564 = vld [vmem:[#allocation2 + $0x94] sm:$0xf]
    %v565 = vld [vmem:[#allocation2 + $0x98] sm:$0xf]
    %v566 = vld [vmem:[#allocation2 + $0x9c] sm:$0xf]
    %v567 = vld [vmem:[#allocation2 + $0xa0] sm:$0xf]
    %v568 = vld [vmem:[#allocation2 + $0xa4] sm:$0xf]
    %v569 = vld [vmem:[#allocation2 + $0xa8] sm:$0xf]
    %v570 = vld [vmem:[#allocation2 + $0xac] sm:$0xf]
    %v571 = vld [vmem:[#allocation2 + $0xb0] sm:$0xf]
    %v572 = vld [vmem:[#allocation2 + $0xb4] sm:$0xf]
    %v573 = vld [vmem:[#allocation2 + $0xb8] sm:$0xf]
    %v574 = vld [vmem:[#allocation2 + $0xbc] sm:$0xf]
    %v575 = vld [vmem:[%s6] sm:$0x1]
    %v576 = vpack.c.bf16 %v520, %v519
    %v577 = vpack.c.bf16 %v522, %v521
    %v578 = vpack.c.bf16 %v524, %v523
    %v579 = vpack.c.bf16 %v526, %v525
    %v581 = vshrl.u32 %v576, 16
    %v583 = vrot.slane %v581, 7
    %v584 = vshll.u32 %v576, 16
    %v586 = vor.u32 %v583, %v584
    %v588 = vshrl.u32 %v577, 16
    %v590 = vrot.slane %v588, 7
    %v591 = vshll.u32 %v577, 16
    %v593 = vor.u32 %v590, %v591
    %v595 = vshrl.u32 %v578, 16
    %v597 = vrot.slane %v595, 7
    %v598 = vshll.u32 %v578, 16
    %v600 = vor.u32 %v597, %v598
    %v602 = vshrl.u32 %v579, 16
    %v604 = vrot.slane %v602, 7
    %v605 = vshll.u32 %v579, 16
    %v607 = vor.u32 %v604, %v605
    %vm612 = vcmask 1040384
    %vm613 = vsmask.f32 256
    %vm614 = vmand %vm612, %vm613
    %v615 = vsel %vm614, 0, %v586
    %v616 = vsel %vm614, 0, %v593
    %v617 = vsel %vm614, 0, %v600
    %v618 = vsel %vm614, 0, %v607
    %v619 = vrot.slane %v584, 1
    %v620 = vor.u32 %v581, %v619
    %v621 = vrot.slane %v591, 1
    %v622 = vor.u32 %v588, %v621
    %v623 = vrot.slane %v598, 1
    %v624 = vor.u32 %v595, %v623
    %v625 = vrot.slane %v605, 1
    %v626 = vor.u32 %v602, %v625
    %vm631 = vcmask 1047552
    %vm632 = vsmask.f32 7424
    %vm633 = vmand %vm631, %vm632
    %v634 = vsel %vm633, %v620, 0
    %v635 = vsel %vm633, %v622, 0
    %v636 = vsel %vm633, %v624, 0
    %v637 = vsel %vm633, %v626, 0
    %v654 = vunpack.c.l.b16 %v543
    %v655 = vunpack.c.l.b16 %v544
    %v656 = vunpack.c.l.b16 %v545
    %v657 = vunpack.c.l.b16 %v546
    %v658 = vunpack.c.l.b16 %v547
    %v659 = vunpack.c.l.b16 %v548
    %v660 = vunpack.c.l.b16 %v549
    %v661 = vunpack.c.l.b16 %v550
    %v662 = vunpack.c.l.b16 %v551
    %v663 = vunpack.c.l.b16 %v552
    %v664 = vunpack.c.l.b16 %v553
    %v665 = vunpack.c.l.b16 %v554
    %v666 = vunpack.c.l.b16 %v555
    %v667 = vunpack.c.l.b16 %v556
    %v668 = vunpack.c.l.b16 %v557
    %v669 = vunpack.c.l.b16 %v558
    %v670 = vpack.c.b16 %v655, %v654
    %v671 = vpack.c.b16 %v657, %v656
    %v672 = vpack.c.b16 %v659, %v658
    %v673 = vpack.c.b16 %v661, %v660
    %v674 = vpack.c.b16 %v663, %v662
    %v675 = vpack.c.b16 %v665, %v664
    %v676 = vpack.c.b16 %v667, %v666
    %v677 = vpack.c.b16 %v669, %v668
    %686 = vmatprep.subr.bf16.mxu0 0
    %687 = vmatpush1.bf16.msra.mxu0 %v677
    %688 = vmatprep.subr.bf16.mxu0 0
    %689 = vmatpush1.bf16.msra.mxu0 %v676
    %690 = vmatprep.subr.bf16.mxu0 0
    %691 = vmatpush1.bf16.msra.mxu0 %v675
    %692 = vmatprep.subr.bf16.mxu0 0
    %693 = vmatpush1.bf16.msra.mxu0 %v674
    %694 = vmatprep.subr.bf16.mxu0 0
    %695 = vmatpush1.bf16.msra.mxu0 %v673
    %696 = vmatprep.subr.bf16.mxu0 0
    %697 = vmatpush1.bf16.msra.mxu0 %v672
    %698 = vmatprep.subr.bf16.mxu0 0
    %699 = vmatpush1.bf16.msra.mxu0 %v671
    %700 = vmatprep.subr.bf16.mxu0 0
    %701 = vmatpush1.bf16.msra.mxu0 %v670
    %702 = vmatprep.subr.bf16.mxu0 0
    %703 = vmatpush2.bf16.msra.mxu0 0
    %704 = vmatprep.subr.bf16.mxu0 0
    %705 = vmatpush2.bf16.msra.mxu0 0
    %706 = vmatprep.subr.bf16.mxu0 0
    %707 = vmatpush2.bf16.msra.mxu0 0
    %708 = vmatprep.subr.bf16.mxu0 0
    %709 = vmatpush2.bf16.msra.mxu0 0
    %710 = vmatprep.subr.bf16.mxu0 0
    %711 = vmatpush2.bf16.msra.mxu0 0
    %712 = vmatprep.subr.bf16.mxu0 0
    %713 = vmatpush2.bf16.msra.mxu0 0
    %714 = vmatprep.subr.bf16.mxu0 0
    %715 = vmatpush2.bf16.msra.mxu0 0
    %716 = vmatprep.subr.bf16.mxu0 0
    %717 = vmatpush2.bf16.msra.mxu0 0
    %718 = vmatprep.mubr.bf16.mxu0 0
    %719 = vmatmul.mubr.bf16.gmra.mxu0 %v576
    %v720 = vpop.f32.mrf.mxu0
    %v721 = vadd.f32 0.0, %v720
    %v722 = vpop.f32.mrf.mxu0
    %v723 = vpop.f32.mrf.mxu0
    %v724 = vadd.f32 0.0, %v723
    %v725 = vpop.f32.mrf.mxu0
    %726 = vmatprep.mubr.bf16.mxu0 0
    %727 = vmatmul.mubr.bf16.gmra.mxu0 %v577
    %v728 = vpop.f32.mrf.mxu0
    %v729 = vadd.f32 0.0, %v728
    %v730 = vpop.f32.mrf.mxu0
    %v731 = vpop.f32.mrf.mxu0
    %v732 = vadd.f32 0.0, %v731
    %v733 = vpop.f32.mrf.mxu0
    %734 = vmatprep.mubr.bf16.mxu0 0
    %735 = vmatmul.mubr.bf16.gmra.mxu0 %v578
    %v736 = vpop.f32.mrf.mxu0
    %v737 = vadd.f32 0.0, %v736
    %v738 = vpop.f32.mrf.mxu0
    %v739 = vpop.f32.mrf.mxu0
    %v740 = vadd.f32 0.0, %v739
    %v741 = vpop.f32.mrf.mxu0
    %742 = vmatprep.mubr.bf16.mxu0 0
    %743 = vmatmul.mubr.bf16.gmra.mxu0 %v579
    %v744 = vpop.f32.mrf.mxu0
    %v745 = vadd.f32 0.0, %v744
    %v746 = vpop.f32.mrf.mxu0
    %v747 = vpop.f32.mrf.mxu0
    %v748 = vadd.f32 0.0, %v747
    %v749 = vpop.f32.mrf.mxu0
    %750 = vdwg.mxu0
    %v767 = vunpack.c.l.b16 %v527
    %v768 = vunpack.c.l.b16 %v528
    %v769 = vunpack.c.l.b16 %v529
    %v770 = vunpack.c.l.b16 %v530
    %v771 = vunpack.c.l.b16 %v531
    %v772 = vunpack.c.l.b16 %v532
    %v773 = vunpack.c.l.b16 %v533
    %v774 = vunpack.c.l.b16 %v534
    %v775 = vunpack.c.l.b16 %v535
    %v776 = vunpack.c.l.b16 %v536
    %v777 = vunpack.c.l.b16 %v537
    %v778 = vunpack.c.l.b16 %v538
    %v779 = vunpack.c.l.b16 %v539
    %v780 = vunpack.c.l.b16 %v540
    %v781 = vunpack.c.l.b16 %v541
    %v782 = vunpack.c.l.b16 %v542
    %v783 = vpack.c.b16 %v768, %v767
    %v784 = vpack.c.b16 %v770, %v769
    %v785 = vpack.c.b16 %v772, %v771
    %v786 = vpack.c.b16 %v774, %v773
    %v787 = vpack.c.b16 %v776, %v775
    %v788 = vpack.c.b16 %v778, %v777
    %v789 = vpack.c.b16 %v780, %v779
    %v790 = vpack.c.b16 %v782, %v781
    %799 = vmatprep.subr.bf16.mxu0 0
    %800 = vmatpush1.bf16.msra.mxu0 %v790
    %801 = vmatprep.subr.bf16.mxu0 0
    %802 = vmatpush1.bf16.msra.mxu0 %v789
    %803 = vmatprep.subr.bf16.mxu0 0
    %804 = vmatpush1.bf16.msra.mxu0 %v788
    %805 = vmatprep.subr.bf16.mxu0 0
    %806 = vmatpush1.bf16.msra.mxu0 %v787
    %807 = vmatprep.subr.bf16.mxu0 0
    %808 = vmatpush1.bf16.msra.mxu0 %v786
    %809 = vmatprep.subr.bf16.mxu0 0
    %810 = vmatpush1.bf16.msra.mxu0 %v785
    %811 = vmatprep.subr.bf16.mxu0 0
    %812 = vmatpush1.bf16.msra.mxu0 %v784
    %813 = vmatprep.subr.bf16.mxu0 0
    %814 = vmatpush1.bf16.msra.mxu0 %v783
    %815 = vmatprep.subr.bf16.mxu0 0
    %816 = vmatpush2.bf16.msra.mxu0 0
    %817 = vmatprep.subr.bf16.mxu0 0
    %818 = vmatpush2.bf16.msra.mxu0 0
    %819 = vmatprep.subr.bf16.mxu0 0
    %820 = vmatpush2.bf16.msra.mxu0 0
    %821 = vmatprep.subr.bf16.mxu0 0
    %822 = vmatpush2.bf16.msra.mxu0 0
    %823 = vmatprep.subr.bf16.mxu0 0
    %824 = vmatpush2.bf16.msra.mxu0 0
    %825 = vmatprep.subr.bf16.mxu0 0
    %826 = vmatpush2.bf16.msra.mxu0 0
    %827 = vmatprep.subr.bf16.mxu0 0
    %828 = vmatpush2.bf16.msra.mxu0 0
    %829 = vmatprep.subr.bf16.mxu0 0
    %830 = vmatpush2.bf16.msra.mxu0 0
    %831 = vmatprep.mubr.bf16.mxu0 0
    %832 = vmatmul.mubr.bf16.gmra.mxu0 %v615
    %v833 = vpop.f32.mrf.mxu0
    %v834 = vadd.f32 %v721, %v833
    %v835 = vpop.f32.mrf.mxu0
    %v836 = vpop.f32.mrf.mxu0
    %v837 = vadd.f32 %v724, %v836
    %v838 = vpop.f32.mrf.mxu0
    %839 = vmatprep.mubr.bf16.mxu0 0
    %840 = vmatmul.mubr.bf16.gmra.mxu0 %v616
    %v841 = vpop.f32.mrf.mxu0
    %v842 = vadd.f32 %v729, %v841
    %v843 = vpop.f32.mrf.mxu0
    %v844 = vpop.f32.mrf.mxu0
    %v845 = vadd.f32 %v732, %v844
    %v846 = vpop.f32.mrf.mxu0
    %847 = vmatprep.mubr.bf16.mxu0 0
    %848 = vmatmul.mubr.bf16.gmra.mxu0 %v617
    %v849 = vpop.f32.mrf.mxu0
    %v850 = vadd.f32 %v737, %v849
    %v851 = vpop.f32.mrf.mxu0
    %v852 = vpop.f32.mrf.mxu0
    %v853 = vadd.f32 %v740, %v852
    %v854 = vpop.f32.mrf.mxu0
    %855 = vmatprep.mubr.bf16.mxu0 0
    %856 = vmatmul.mubr.bf16.gmra.mxu0 %v618
    %v857 = vpop.f32.mrf.mxu0
    %v858 = vadd.f32 %v745, %v857
    %v859 = vpop.f32.mrf.mxu0
    %v860 = vpop.f32.mrf.mxu0
    %v861 = vadd.f32 %v748, %v860
    %v862 = vpop.f32.mrf.mxu0
    %863 = vdwg.mxu0
    %v880 = vunpack.c.l.b16 %v559
    %v881 = vunpack.c.l.b16 %v560
    %v882 = vunpack.c.l.b16 %v561
    %v883 = vunpack.c.l.b16 %v562
    %v884 = vunpack.c.l.b16 %v563
    %v885 = vunpack.c.l.b16 %v564
    %v886 = vunpack.c.l.b16 %v565
    %v887 = vunpack.c.l.b16 %v566
    %v888 = vunpack.c.l.b16 %v567
    %v889 = vunpack.c.l.b16 %v568
    %v890 = vunpack.c.l.b16 %v569
    %v891 = vunpack.c.l.b16 %v570
    %v892 = vunpack.c.l.b16 %v571
    %v893 = vunpack.c.l.b16 %v572
    %v894 = vunpack.c.l.b16 %v573
    %v895 = vunpack.c.l.b16 %v574
    %v896 = vpack.c.b16 %v881, %v880
    %v897 = vpack.c.b16 %v883, %v882
    %v898 = vpack.c.b16 %v885, %v884
    %v899 = vpack.c.b16 %v887, %v886
    %v900 = vpack.c.b16 %v889, %v888
    %v901 = vpack.c.b16 %v891, %v890
    %v902 = vpack.c.b16 %v893, %v892
    %v903 = vpack.c.b16 %v895, %v894
    %912 = vmatprep.subr.bf16.mxu0 0
    %913 = vmatpush1.bf16.msra.mxu0 %v903
    %914 = vmatprep.subr.bf16.mxu0 0
    %915 = vmatpush1.bf16.msra.mxu0 %v902
    %916 = vmatprep.subr.bf16.mxu0 0
    %917 = vmatpush1.bf16.msra.mxu0 %v901
    %918 = vmatprep.subr.bf16.mxu0 0
    %919 = vmatpush1.bf16.msra.mxu0 %v900
    %920 = vmatprep.subr.bf16.mxu0 0
    %921 = vmatpush1.bf16.msra.mxu0 %v899
    %922 = vmatprep.subr.bf16.mxu0 0
    %923 = vmatpush1.bf16.msra.mxu0 %v898
    %924 = vmatprep.subr.bf16.mxu0 0
    %925 = vmatpush1.bf16.msra.mxu0 %v897
    %926 = vmatprep.subr.bf16.mxu0 0
    %927 = vmatpush1.bf16.msra.mxu0 %v896
    %928 = vmatprep.subr.bf16.mxu0 0
    %929 = vmatpush2.bf16.msra.mxu0 0
    %930 = vmatprep.subr.bf16.mxu0 0
    %931 = vmatpush2.bf16.msra.mxu0 0
    %932 = vmatprep.subr.bf16.mxu0 0
    %933 = vmatpush2.bf16.msra.mxu0 0
    %934 = vmatprep.subr.bf16.mxu0 0
    %935 = vmatpush2.bf16.msra.mxu0 0
    %936 = vmatprep.subr.bf16.mxu0 0
    %937 = vmatpush2.bf16.msra.mxu0 0
    %938 = vmatprep.subr.bf16.mxu0 0
    %939 = vmatpush2.bf16.msra.mxu0 0
    %940 = vmatprep.subr.bf16.mxu0 0
    %941 = vmatpush2.bf16.msra.mxu0 0
    %942 = vmatprep.subr.bf16.mxu0 0
    %943 = vmatpush2.bf16.msra.mxu0 0
    %944 = vmatprep.mubr.bf16.mxu0 0
    %945 = vmatmul.mubr.bf16.gmra.mxu0 %v634
    %v946 = vpop.f32.mrf.mxu0
    %v947 = vadd.f32 0.0, %v946
    %v948 = vpop.f32.mrf.mxu0
    %v949 = vpop.f32.mrf.mxu0
    %v950 = vadd.f32 0.0, %v949
    %v951 = vpop.f32.mrf.mxu0
    %952 = vmatprep.mubr.bf16.mxu0 0
    %953 = vmatmul.mubr.bf16.gmra.mxu0 %v635
    %v954 = vpop.f32.mrf.mxu0
    %v955 = vadd.f32 0.0, %v954
    %v956 = vpop.f32.mrf.mxu0
    %v957 = vpop.f32.mrf.mxu0
    %v958 = vadd.f32 0.0, %v957
    %v959 = vpop.f32.mrf.mxu0
    %960 = vmatprep.mubr.bf16.mxu0 0
    %961 = vmatmul.mubr.bf16.gmra.mxu0 %v636
    %v962 = vpop.f32.mrf.mxu0
    %v963 = vadd.f32 0.0, %v962
    %v964 = vpop.f32.mrf.mxu0
    %v965 = vpop.f32.mrf.mxu0
    %v966 = vadd.f32 0.0, %v965
    %v967 = vpop.f32.mrf.mxu0
    %968 = vmatprep.mubr.bf16.mxu0 0
    %969 = vmatmul.mubr.bf16.gmra.mxu0 %v637
    %v970 = vpop.f32.mrf.mxu0
    %v971 = vadd.f32 0.0, %v970
    %v972 = vpop.f32.mrf.mxu0
    %v973 = vpop.f32.mrf.mxu0
    %v974 = vadd.f32 0.0, %v973
    %v975 = vpop.f32.mrf.mxu0
    %976 = vdwg.mxu0
    %v977 = vadd.f32 %v834, %v947
    %v978 = vadd.f32 %v837, %v950
    %v979 = vadd.f32 %v842, %v955
    %v980 = vadd.f32 %v845, %v958
    %v981 = vadd.f32 %v850, %v963
    %v982 = vadd.f32 %v853, %v966
    %v983 = vadd.f32 %v858, %v971
    %v984 = vadd.f32 %v861, %v974
    %v986 = vlaneseq
    %v987 = vshrl.u32 %v986, 7
    %v988 = vsub.s32 0, %v987
    %v989 = vrot.slane %v575, %v988
    %v991 = vadd.f32 %v977, %v989
    %v992 = vadd.f32 %v978, %v989
    %v993 = vadd.f32 %v979, %v989
    %v994 = vadd.f32 %v980, %v989
    %v995 = vadd.f32 %v981, %v989
    %v996 = vadd.f32 %v982, %v989
    %v997 = vadd.f32 %v983, %v989
    %v998 = vadd.f32 %v984, %v989
    %v999 = vld [vmem:[%s7] sm:$0x1]
    %v1000 = vld [vmem:[%s8] sm:$0x1]
    %v1001 = vadd.f32 %v991, %v992
    %v1002 = vrot.slane %v1001, 4
    %v1003 = vadd.f32 %v1001, %v1002
    %v1004 = vrot.slane %v1003, 2
    %v1005 = vadd.f32 %v1003, %v1004
    %v1006 = vrot.slane %v1005, 1
    %v1007 = vadd.f32 %v1005, %v1006
    %v1008 = vadd.f32 %v993, %v994
    %v1009 = vrot.slane %v1008, 4
    %v1010 = vadd.f32 %v1008, %v1009
    %v1011 = vrot.slane %v1010, 2
    %v1012 = vadd.f32 %v1010, %v1011
    %v1013 = vrot.slane %v1012, 1
    %v1014 = vadd.f32 %v1012, %v1013
    %v1015 = vadd.f32 %v995, %v996
    %v1016 = vrot.slane %v1015, 4
    %v1017 = vadd.f32 %v1015, %v1016
    %v1018 = vrot.slane %v1017, 2
    %v1019 = vadd.f32 %v1017, %v1018
    %v1020 = vrot.slane %v1019, 1
    %v1021 = vadd.f32 %v1019, %v1020
    %v1022 = vadd.f32 %v997, %v998
    %v1023 = vrot.slane %v1022, 4
    %v1024 = vadd.f32 %v1022, %v1023
    %v1025 = vrot.slane %v1024, 2
    %v1026 = vadd.f32 %v1024, %v1025
    %v1027 = vrot.slane %v1026, 1
    %v1028 = vadd.f32 %v1026, %v1027
    %v1029 = vmul.f32 %v991, %v991
    %v1030 = vmul.f32 %v992, %v992
    %v1031 = vmul.f32 %v993, %v993
    %v1032 = vmul.f32 %v994, %v994
    %v1033 = vmul.f32 %v995, %v995
    %v1034 = vmul.f32 %v996, %v996
    %v1035 = vmul.f32 %v997, %v997
    %v1036 = vmul.f32 %v998, %v998
    %v1037 = vadd.f32 %v1029, %v1030
    %v1038 = vrot.slane %v1037, 4
    %v1039 = vadd.f32 %v1037, %v1038
    %v1040 = vrot.slane %v1039, 2
    %v1041 = vadd.f32 %v1039, %v1040
    %v1042 = vrot.slane %v1041, 1
    %v1043 = vadd.f32 %v1041, %v1042
    %v1044 = vadd.f32 %v1031, %v1032
    %v1045 = vrot.slane %v1044, 4
    %v1046 = vadd.f32 %v1044, %v1045
    %v1047 = vrot.slane %v1046, 2
    %v1048 = vadd.f32 %v1046, %v1047
    %v1049 = vrot.slane %v1048, 1
    %v1050 = vadd.f32 %v1048, %v1049
    %v1051 = vadd.f32 %v1033, %v1034
    %v1052 = vrot.slane %v1051, 4
    %v1053 = vadd.f32 %v1051, %v1052
    %v1054 = vrot.slane %v1053, 2
    %v1055 = vadd.f32 %v1053, %v1054
    %v1056 = vrot.slane %v1055, 1
    %v1057 = vadd.f32 %v1055, %v1056
    %v1058 = vadd.f32 %v1035, %v1036
    %v1059 = vrot.slane %v1058, 4
    %v1060 = vadd.f32 %v1058, %v1059
    %v1061 = vrot.slane %v1060, 2
    %v1062 = vadd.f32 %v1060, %v1061
    %v1063 = vrot.slane %v1062, 1
    %v1064 = vadd.f32 %v1062, %v1063
    %v1069 = vsel %vm174, %v1014, %v1007
    %v1070 = vsel %vm176, %v1021, %v1069
    %v1071 = vsel %vm178, %v1028, %v1070
    %v1077 = vsel %vm185, %v1050, %v1043
    %v1078 = vsel %vm187, %v1057, %v1077
    %v1079 = vsel %vm189, %v1064, %v1078
    %v1081 = vsel %vm192, %v1071, %v1079
    %1082 = vmatprep.subr.mxu0 0.0
    %1083 = vmatpush1.msra.mxu0 %v87
    %1084 = vmatprep.subr.mxu0 0.0
    %1085 = vmatpush1.msra.mxu0 %v86
    %1086 = vmatprep.subr.mxu0 0.0
    %1087 = vmatpush1.msra.mxu0 %v85
    %1088 = vmatprep.subr.mxu0 0.0
    %1089 = vmatpush1.msra.mxu0 %v84
    %1090 = vmatprep.subr.mxu0 0.0
    %1091 = vmatpush1.msra.mxu0 %v83
    %1092 = vmatprep.subr.mxu0 0.0
    %1093 = vmatpush1.msra.mxu0 %v82
    %1094 = vmatprep.subr.mxu0 0.0
    %1095 = vmatpush1.msra.mxu0 %v81
    %1096 = vmatprep.subr.mxu0 0.0
    %1097 = vmatpush1.msra.mxu0 %v80
    %1098 = vmatprep.subr.mxu0 0.0
    %1099 = vmatpush1.msra.mxu0 %v79
    %1100 = vmatprep.subr.mxu0 0.0
    %1101 = vmatpush1.msra.mxu0 %v78
    %1102 = vmatprep.subr.mxu0 0.0
    %1103 = vmatpush1.msra.mxu0 %v77
    %1104 = vmatprep.subr.mxu0 0.0
    %1105 = vmatpush1.msra.mxu0 %v76
    %1106 = vmatprep.subr.mxu0 0.0
    %1107 = vmatpush1.msra.mxu0 %v75
    %1108 = vmatprep.subr.mxu0 0.0
    %1109 = vmatpush1.msra.mxu0 %v74
    %1110 = vmatprep.subr.mxu0 0.0
    %1111 = vmatpush1.msra.mxu0 %v73
    %1112 = vmatprep.subr.mxu0 0.0
    %1113 = vmatpush1.msra.mxu0 %v72
    %1114 = vmatprep.subr.mxu0 0.0
    %1115 = vmatpush2.msra.mxu0 0.0
    %1116 = vmatprep.subr.mxu0 0.0
    %1117 = vmatpush2.msra.mxu0 0.0
    %1118 = vmatprep.subr.mxu0 0.0
    %1119 = vmatpush2.msra.mxu0 0.0
    %1120 = vmatprep.subr.mxu0 0.0
    %1121 = vmatpush2.msra.mxu0 0.0
    %1122 = vmatprep.subr.mxu0 0.0
    %1123 = vmatpush2.msra.mxu0 0.0
    %1124 = vmatprep.subr.mxu0 0.0
    %1125 = vmatpush2.msra.mxu0 0.0
    %1126 = vmatprep.subr.mxu0 0.0
    %1127 = vmatpush2.msra.mxu0 0.0
    %1128 = vmatprep.subr.mxu0 0.0
    %1129 = vmatpush2.msra.mxu0 0.0
    %1130 = vmatprep.subr.mxu0 0.0
    %1131 = vmatpush2.msra.mxu0 0.0
    %1132 = vmatprep.subr.mxu0 0.0
    %1133 = vmatpush2.msra.mxu0 0.0
    %1134 = vmatprep.subr.mxu0 0.0
    %1135 = vmatpush2.msra.mxu0 0.0
    %1136 = vmatprep.subr.mxu0 0.0
    %1137 = vmatpush2.msra.mxu0 0.0
    %1138 = vmatprep.subr.mxu0 0.0
    %1139 = vmatpush2.msra.mxu0 0.0
    %1140 = vmatprep.subr.mxu0 0.0
    %1141 = vmatpush2.msra.mxu0 0.0
    %1142 = vmatprep.subr.mxu0 0.0
    %1143 = vmatpush2.msra.mxu0 0.0
    %1144 = vmatprep.subr.mxu0 0.0
    %1145 = vmatpush2.msra.mxu0 0.0
    %1146 = vmatprep.mubr.f32.mxu0 0.0
    %1147 = vmatmul.mubr.f32.gmra.mxu0 %v1081
    %v1148 = vpop.f32.mrf.mxu0
    %v1149 = vadd.f32 0.0, %v1148
    %v1150 = vpop.f32.mrf.mxu0
    %1151 = vdwg.mxu0
    %v1152 = vmul.f32 %v1149, 0.015625
    %v1153 = vmul.f32 %v1152, %v1152
    %v1155 = vrot.slane %v1153, 4
    %v1157 = vsub.f32 %v1152, %v1155
    %v1158 = vadd.f32 %v1157, 1e-06
    %v1159 = vrsqrt.pop %v1158
    %v1160 = vsel %vm192, %v1152, %v1159
    %v1162 = vsel %vm273, %v1160, 0
    %1164 = vmatprep.subr.mxu0 0.0
    %1165 = vmatpush1.msra.mxu0 0.0
    %1166 = vmatprep.subr.mxu0 0.0
    %1167 = vmatpush1.msra.mxu0 0.0
    %1168 = vmatprep.subr.mxu0 0.0
    %1169 = vmatpush1.msra.mxu0 0.0
    %1170 = vmatprep.subr.mxu0 0.0
    %1171 = vmatpush1.msra.mxu0 0.0
    %1172 = vmatprep.subr.mxu0 0.0
    %1173 = vmatpush1.msra.mxu0 0.0
    %1174 = vmatprep.subr.mxu0 0.0
    %1175 = vmatpush1.msra.mxu0 0.0
    %1176 = vmatprep.subr.mxu0 0.0
    %1177 = vmatpush1.msra.mxu0 0.0
    %1178 = vmatprep.subr.mxu0 0.0
    %1179 = vmatpush1.msra.mxu0 0.0
    %1180 = vmatprep.subr.mxu0 0.0
    %1181 = vmatpush1.msra.mxu0 0.0
    %1182 = vmatprep.subr.mxu0 0.0
    %1183 = vmatpush1.msra.mxu0 0.0
    %1184 = vmatprep.subr.mxu0 0.0
    %1185 = vmatpush1.msra.mxu0 0.0
    %1186 = vmatprep.subr.mxu0 0.0
    %1187 = vmatpush1.msra.mxu0 0.0
    %1188 = vmatprep.subr.mxu0 0.0
    %1189 = vmatpush1.msra.mxu0 %v71
    %1190 = vmatprep.subr.mxu0 0.0
    %1191 = vmatpush1.msra.mxu0 %v70
    %1192 = vmatprep.subr.mxu0 0.0
    %1193 = vmatpush1.msra.mxu0 %v69
    %1194 = vmatprep.subr.mxu0 0.0
    %1195 = vmatpush1.msra.mxu0 %v68
    %1196 = vmatprep.subr.mxu0 0.0
    %1197 = vmatpush2.msra.mxu0 0.0
    %1198 = vmatprep.subr.mxu0 0.0
    %1199 = vmatpush2.msra.mxu0 0.0
    %1200 = vmatprep.subr.mxu0 0.0
    %1201 = vmatpush2.msra.mxu0 0.0
    %1202 = vmatprep.subr.mxu0 0.0
    %1203 = vmatpush2.msra.mxu0 0.0
    %1204 = vmatprep.subr.mxu0 0.0
    %1205 = vmatpush2.msra.mxu0 0.0
    %1206 = vmatprep.subr.mxu0 0.0
    %1207 = vmatpush2.msra.mxu0 0.0
    %1208 = vmatprep.subr.mxu0 0.0
    %1209 = vmatpush2.msra.mxu0 0.0
    %1210 = vmatprep.subr.mxu0 0.0
    %1211 = vmatpush2.msra.mxu0 0.0
    %1212 = vmatprep.subr.mxu0 0.0
    %1213 = vmatpush2.msra.mxu0 0.0
    %1214 = vmatprep.subr.mxu0 0.0
    %1215 = vmatpush2.msra.mxu0 0.0
    %1216 = vmatprep.subr.mxu0 0.0
    %1217 = vmatpush2.msra.mxu0 0.0
    %1218 = vmatprep.subr.mxu0 0.0
    %1219 = vmatpush2.msra.mxu0 0.0
    %1220 = vmatprep.subr.mxu0 0.0
    %1221 = vmatpush2.msra.mxu0 0.0
    %1222 = vmatprep.subr.mxu0 0.0
    %1223 = vmatpush2.msra.mxu0 0.0
    %1224 = vmatprep.subr.mxu0 0.0
    %1225 = vmatpush2.msra.mxu0 0.0
    %1226 = vmatprep.subr.mxu0 0.0
    %1227 = vmatpush2.msra.mxu0 0.0
    %1228 = vmatprep.mubr.f32.mxu0 0.0
    %1229 = vmatmul.mubr.f32.gmra.mxu0 %v1162
    %v1230 = vpop.f32.mrf.mxu0
    %v1231 = vadd.f32 0.0, %v1230
    %v1232 = vpop.f32.mrf.mxu0
    %1233 = vdwg.mxu0
    %v1235 = vlaneseq
    %v1236 = vshrl.u32 %v1235, 7
    %v1237 = vsub.s32 0, %v1236
    %v1238 = vrot.slane %v999, %v1237
    %v1240 = vmul.f32 %v1231, %v1238
    %v1242 = vrot.slane %v1240, 4
    %v1244 = vmul.f32 %v1231, %v1242
    %v1246 = vlaneseq
    %v1247 = vshrl.u32 %v1246, 7
    %v1248 = vsub.s32 0, %v1247
    %v1249 = vrot.slane %v1000, %v1248
    %v1251 = vsub.f32 %v1249, %v1244
    %v1252 = vcombine.high %v1240, %v1240
    %v1254 = vunpack.c.l.s4 1966171168
    %v1255 = vunpack.c.0.s8 %v1254
    %v1256 = vlaneseq
    %v1257 = vshrl.u32 %v1256, 7
    %v1258 = vsub.s32 %v1255, %v1257
    %v1259 = vrot.slane %v1252, %v1258
    %v1260 = vcombine.high %v1259, %v1259
    %v1262 = vunpack.c.l.s4 1966171168
    %v1263 = vunpack.c.0.s8 %v1262
    %v1264 = vlaneseq
    %v1265 = vshrl.u32 %v1264, 7
    %v1266 = vsub.s32 %v1263, %v1265
    %v1267 = vrot.slane %v1259, %v1266
    %v1269 = vunpack.c.l.s4 1966171168
    %v1270 = vunpack.c.0.s8 %v1269
    %v1271 = vlaneseq
    %v1272 = vshrl.u32 %v1271, 7
    %v1273 = vsub.s32 %v1270, %v1272
    %v1274 = vrot.slane %v1260, %v1273
    %v1275 = vcombine.high %v1267, %v1267
    %v1276 = vcombine.high %v1274, %v1274
    %v1277 = vlaneseq
    %v1278 = vshrl.u32 %v1277, 7
    %v1279 = vsub.s32 0, %v1278
    %v1280 = vrot.slane %v1267, %v1279
    %v1281 = vlaneseq
    %v1282 = vshrl.u32 %v1281, 7
    %v1283 = vsub.s32 0, %v1282
    %v1284 = vrot.slane %v1274, %v1283
    %v1285 = vlaneseq
    %v1286 = vshrl.u32 %v1285, 7
    %v1287 = vsub.s32 0, %v1286
    %v1288 = vrot.slane %v1275, %v1287
    %v1289 = vlaneseq
    %v1290 = vshrl.u32 %v1289, 7
    %v1291 = vsub.s32 0, %v1290
    %v1292 = vrot.slane %v1276, %v1291
    %v1297 = vmul.f32 %v991, %v1280
    %v1298 = vmul.f32 %v992, %v1280
    %v1299 = vmul.f32 %v993, %v1284
    %v1300 = vmul.f32 %v994, %v1284
    %v1301 = vmul.f32 %v995, %v1288
    %v1302 = vmul.f32 %v996, %v1288
    %v1303 = vmul.f32 %v997, %v1292
    %v1304 = vmul.f32 %v998, %v1292
    %v1307 = vunpack.c.l.s4 1966171168
    %v1308 = vunpack.c.0.s8 %v1307
    %v1309 = vlaneseq
    %v1310 = vshrl.u32 %v1309, 7
    %v1311 = vsub.s32 %v1308, %v1310
    %v1312 = vrot.slane %v1251, %v1311
    %v1313 = vcombine.high %v1312, %v1312
    %v1315 = vunpack.c.l.s4 1966171168
    %v1316 = vunpack.c.0.s8 %v1315
    %v1317 = vlaneseq
    %v1318 = vshrl.u32 %v1317, 7
    %v1319 = vsub.s32 %v1316, %v1318
    %v1320 = vrot.slane %v1312, %v1319
    %v1322 = vunpack.c.l.s4 1966171168
    %v1323 = vunpack.c.0.s8 %v1322
    %v1324 = vlaneseq
    %v1325 = vshrl.u32 %v1324, 7
    %v1326 = vsub.s32 %v1323, %v1325
    %v1327 = vrot.slane %v1313, %v1326
    %v1328 = vcombine.high %v1320, %v1320
    %v1329 = vcombine.high %v1327, %v1327
    %v1330 = vlaneseq
    %v1331 = vshrl.u32 %v1330, 7
    %v1332 = vsub.s32 0, %v1331
    %v1333 = vrot.slane %v1320, %v1332
    %v1334 = vlaneseq
    %v1335 = vshrl.u32 %v1334, 7
    %v1336 = vsub.s32 0, %v1335
    %v1337 = vrot.slane %v1327, %v1336
    %v1338 = vlaneseq
    %v1339 = vshrl.u32 %v1338, 7
    %v1340 = vsub.s32 0, %v1339
    %v1341 = vrot.slane %v1328, %v1340
    %v1342 = vlaneseq
    %v1343 = vshrl.u32 %v1342, 7
    %v1344 = vsub.s32 0, %v1343
    %v1345 = vrot.slane %v1329, %v1344
    %v1350 = vadd.f32 %v1297, %v1333
    %v1351 = vadd.f32 %v1298, %v1333
    %v1352 = vadd.f32 %v1299, %v1337
    %v1353 = vadd.f32 %v1300, %v1337
    %v1354 = vadd.f32 %v1301, %v1341
    %v1355 = vadd.f32 %v1302, %v1341
    %v1356 = vadd.f32 %v1303, %v1345
    %v1357 = vadd.f32 %v1304, %v1345
    %v1358 = vxor.u32 %v1350, 2147483648
    %v1359 = vxor.u32 %v1351, 2147483648
    %v1360 = vxor.u32 %v1352, 2147483648
    %v1361 = vxor.u32 %v1353, 2147483648
    %v1362 = vxor.u32 %v1354, 2147483648
    %v1363 = vxor.u32 %v1355, 2147483648
    %v1364 = vxor.u32 %v1356, 2147483648
    %v1365 = vxor.u32 %v1357, 2147483648
    %v1366 = vmul.f32 %v1358, 1.442695
    %v1367 = vpow.pop %v1366
    %v1368 = vmul.f32 %v1359, 1.442695
    %v1369 = vpow.pop %v1368
    %v1370 = vmul.f32 %v1360, 1.442695
    %v1371 = vpow.pop %v1370
    %v1372 = vmul.f32 %v1361, 1.442695
    %v1373 = vpow.pop %v1372
    %v1374 = vmul.f32 %v1362, 1.442695
    %v1375 = vpow.pop %v1374
    %v1376 = vmul.f32 %v1363, 1.442695
    %v1377 = vpow.pop %v1376
    %v1378 = vmul.f32 %v1364, 1.442695
    %v1379 = vpow.pop %v1378
    %v1380 = vmul.f32 %v1365, 1.442695
    %v1381 = vpow.pop %v1380
    %v1382 = vadd.f32 %v1367, 1.0
    %v1383 = vadd.f32 %v1369, 1.0
    %v1384 = vadd.f32 %v1371, 1.0
    %v1385 = vadd.f32 %v1373, 1.0
    %v1386 = vadd.f32 %v1375, 1.0
    %v1387 = vadd.f32 %v1377, 1.0
    %v1388 = vadd.f32 %v1379, 1.0
    %v1389 = vadd.f32 %v1381, 1.0
    %v1390 = vrcp.pop %v1382
    %v1391 = vmul.f32 1.0, %v1390
    %v1392 = vrcp.pop %v1383
    %v1393 = vmul.f32 1.0, %v1392
    %v1394 = vrcp.pop %v1384
    %v1395 = vmul.f32 1.0, %v1394
    %v1396 = vrcp.pop %v1385
    %v1397 = vmul.f32 1.0, %v1396
    %v1398 = vrcp.pop %v1386
    %v1399 = vmul.f32 1.0, %v1398
    %v1400 = vrcp.pop %v1387
    %v1401 = vmul.f32 1.0, %v1400
    %v1402 = vrcp.pop %v1388
    %v1403 = vmul.f32 1.0, %v1402
    %v1404 = vrcp.pop %v1389
    %v1405 = vmul.f32 1.0, %v1404
    %v1406 = vmul.f32 %v1350, %v1391
    %v1407 = vmul.f32 %v1351, %v1393
    %v1408 = vmul.f32 %v1352, %v1395
    %v1409 = vmul.f32 %v1353, %v1397
    %v1410 = vmul.f32 %v1354, %v1399
    %v1411 = vmul.f32 %v1355, %v1401
    %v1412 = vmul.f32 %v1356, %v1403
    %v1413 = vmul.f32 %v1357, %v1405
    %v1414 = vld [vmem:[#allocation5] sm:$0xf]
    %v1415 = vld [vmem:[#allocation5 + $0x4] sm:$0xf]
    %v1416 = vld [vmem:[#allocation5 + $0x8] sm:$0xf]
    %v1417 = vld [vmem:[#allocation5 + $0xc] sm:$0xf]
    %v1418 = vld [vmem:[#allocation5 + $0x10] sm:$0xf]
    %v1419 = vld [vmem:[#allocation5 + $0x14] sm:$0xf]
    %v1420 = vld [vmem:[#allocation5 + $0x18] sm:$0xf]
    %v1421 = vld [vmem:[#allocation5 + $0x1c] sm:$0xf]
    %v1422 = vld [vmem:[#allocation5 + $0x20] sm:$0xf]
    %v1423 = vld [vmem:[#allocation5 + $0x24] sm:$0xf]
    %v1424 = vld [vmem:[#allocation5 + $0x28] sm:$0xf]
    %v1425 = vld [vmem:[#allocation5 + $0x2c] sm:$0xf]
    %v1426 = vld [vmem:[#allocation5 + $0x30] sm:$0xf]
    %v1427 = vld [vmem:[#allocation5 + $0x34] sm:$0xf]
    %v1428 = vld [vmem:[#allocation5 + $0x38] sm:$0xf]
    %v1429 = vld [vmem:[#allocation5 + $0x3c] sm:$0xf]
    %v1430 = vld [vmem:[#allocation5 + $0x40] sm:$0xf]
    %v1431 = vld [vmem:[#allocation5 + $0x44] sm:$0xf]
    %v1432 = vld [vmem:[#allocation5 + $0x48] sm:$0xf]
    %v1433 = vld [vmem:[#allocation5 + $0x4c] sm:$0xf]
    %v1434 = vld [vmem:[#allocation5 + $0x50] sm:$0xf]
    %v1435 = vld [vmem:[#allocation5 + $0x54] sm:$0xf]
    %v1436 = vld [vmem:[#allocation5 + $0x58] sm:$0xf]
    %v1437 = vld [vmem:[#allocation5 + $0x5c] sm:$0xf]
    %v1438 = vld [vmem:[#allocation5 + $0x60] sm:$0xf]
    %v1439 = vld [vmem:[#allocation5 + $0x64] sm:$0xf]
    %v1440 = vld [vmem:[#allocation5 + $0x68] sm:$0xf]
    %v1441 = vld [vmem:[#allocation5 + $0x6c] sm:$0xf]
    %v1442 = vld [vmem:[#allocation5 + $0x70] sm:$0xf]
    %v1443 = vld [vmem:[#allocation5 + $0x74] sm:$0xf]
    %v1444 = vld [vmem:[#allocation5 + $0x78] sm:$0xf]
    %v1445 = vld [vmem:[#allocation5 + $0x7c] sm:$0xf]
    %v1446 = vld [vmem:[#allocation5 + $0x80] sm:$0xf]
    %v1447 = vld [vmem:[#allocation5 + $0x84] sm:$0xf]
    %v1448 = vld [vmem:[#allocation5 + $0x88] sm:$0xf]
    %v1449 = vld [vmem:[#allocation5 + $0x8c] sm:$0xf]
    %v1450 = vld [vmem:[#allocation5 + $0x90] sm:$0xf]
    %v1451 = vld [vmem:[#allocation5 + $0x94] sm:$0xf]
    %v1452 = vld [vmem:[#allocation5 + $0x98] sm:$0xf]
    %v1453 = vld [vmem:[#allocation5 + $0x9c] sm:$0xf]
    %v1454 = vld [vmem:[#allocation5 + $0xa0] sm:$0xf]
    %v1455 = vld [vmem:[#allocation5 + $0xa4] sm:$0xf]
    %v1456 = vld [vmem:[#allocation5 + $0xa8] sm:$0xf]
    %v1457 = vld [vmem:[#allocation5 + $0xac] sm:$0xf]
    %v1458 = vld [vmem:[#allocation5 + $0xb0] sm:$0xf]
    %v1459 = vld [vmem:[#allocation5 + $0xb4] sm:$0xf]
    %v1460 = vld [vmem:[#allocation5 + $0xb8] sm:$0xf]
    %v1461 = vld [vmem:[#allocation5 + $0xbc] sm:$0xf]
    %v1462 = vld [vmem:[%s10] sm:$0x1]
    %v1463 = vpack.c.bf16 %v1407, %v1406
    %v1464 = vpack.c.bf16 %v1409, %v1408
    %v1465 = vpack.c.bf16 %v1411, %v1410
    %v1466 = vpack.c.bf16 %v1413, %v1412
    %v1468 = vshrl.u32 %v1463, 16
    %v1470 = vrot.slane %v1468, 7
    %v1471 = vshll.u32 %v1463, 16
    %v1473 = vor.u32 %v1470, %v1471
    %v1475 = vshrl.u32 %v1464, 16
    %v1477 = vrot.slane %v1475, 7
    %v1478 = vshll.u32 %v1464, 16
    %v1480 = vor.u32 %v1477, %v1478
    %v1482 = vshrl.u32 %v1465, 16
    %v1484 = vrot.slane %v1482, 7
    %v1485 = vshll.u32 %v1465, 16
    %v1487 = vor.u32 %v1484, %v1485
    %v1489 = vshrl.u32 %v1466, 16
    %v1491 = vrot.slane %v1489, 7
    %v1492 = vshll.u32 %v1466, 16
    %v1494 = vor.u32 %v1491, %v1492
    %v1499 = vsel %vm614, 0, %v1473
    %v1500 = vsel %vm614, 0, %v1480
    %v1501 = vsel %vm614, 0, %v1487
    %v1502 = vsel %vm614, 0, %v1494
    %v1503 = vrot.slane %v1471, 1
    %v1504 = vor.u32 %v1468, %v1503
    %v1505 = vrot.slane %v1478, 1
    %v1506 = vor.u32 %v1475, %v1505
    %v1507 = vrot.slane %v1485, 1
    %v1508 = vor.u32 %v1482, %v1507
    %v1509 = vrot.slane %v1492, 1
    %v1510 = vor.u32 %v1489, %v1509
    %v1515 = vsel %vm633, %v1504, 0
    %v1516 = vsel %vm633, %v1506, 0
    %v1517 = vsel %vm633, %v1508, 0
    %v1518 = vsel %vm633, %v1510, 0
    %v1535 = vunpack.c.l.b16 %v1430
    %v1536 = vunpack.c.l.b16 %v1431
    %v1537 = vunpack.c.l.b16 %v1432
    %v1538 = vunpack.c.l.b16 %v1433
    %v1539 = vunpack.c.l.b16 %v1434
    %v1540 = vunpack.c.l.b16 %v1435
    %v1541 = vunpack.c.l.b16 %v1436
    %v1542 = vunpack.c.l.b16 %v1437
    %v1543 = vunpack.c.l.b16 %v1438
    %v1544 = vunpack.c.l.b16 %v1439
    %v1545 = vunpack.c.l.b16 %v1440
    %v1546 = vunpack.c.l.b16 %v1441
    %v1547 = vunpack.c.l.b16 %v1442
    %v1548 = vunpack.c.l.b16 %v1443
    %v1549 = vunpack.c.l.b16 %v1444
    %v1550 = vunpack.c.l.b16 %v1445
    %v1551 = vpack.c.b16 %v1536, %v1535
    %v1552 = vpack.c.b16 %v1538, %v1537
    %v1553 = vpack.c.b16 %v1540, %v1539
    %v1554 = vpack.c.b16 %v1542, %v1541
    %v1555 = vpack.c.b16 %v1544, %v1543
    %v1556 = vpack.c.b16 %v1546, %v1545
    %v1557 = vpack.c.b16 %v1548, %v1547
    %v1558 = vpack.c.b16 %v1550, %v1549
    %1567 = vmatprep.subr.bf16.mxu0 0
    %1568 = vmatpush1.bf16.msra.mxu0 %v1558
    %1569 = vmatprep.subr.bf16.mxu0 0
    %1570 = vmatpush1.bf16.msra.mxu0 %v1557
    %1571 = vmatprep.subr.bf16.mxu0 0
    %1572 = vmatpush1.bf16.msra.mxu0 %v1556
    %1573 = vmatprep.subr.bf16.mxu0 0
    %1574 = vmatpush1.bf16.msra.mxu0 %v1555
    %1575 = vmatprep.subr.bf16.mxu0 0
    %1576 = vmatpush1.bf16.msra.mxu0 %v1554
    %1577 = vmatprep.subr.bf16.mxu0 0
    %1578 = vmatpush1.bf16.msra.mxu0 %v1553
    %1579 = vmatprep.subr.bf16.mxu0 0
    %1580 = vmatpush1.bf16.msra.mxu0 %v1552
    %1581 = vmatprep.subr.bf16.mxu0 0
    %1582 = vmatpush1.bf16.msra.mxu0 %v1551
    %1583 = vmatprep.subr.bf16.mxu0 0
    %1584 = vmatpush2.bf16.msra.mxu0 0
    %1585 = vmatprep.subr.bf16.mxu0 0
    %1586 = vmatpush2.bf16.msra.mxu0 0
    %1587 = vmatprep.subr.bf16.mxu0 0
    %1588 = vmatpush2.bf16.msra.mxu0 0
    %1589 = vmatprep.subr.bf16.mxu0 0
    %1590 = vmatpush2.bf16.msra.mxu0 0
    %1591 = vmatprep.subr.bf16.mxu0 0
    %1592 = vmatpush2.bf16.msra.mxu0 0
    %1593 = vmatprep.subr.bf16.mxu0 0
    %1594 = vmatpush2.bf16.msra.mxu0 0
    %1595 = vmatprep.subr.bf16.mxu0 0
    %1596 = vmatpush2.bf16.msra.mxu0 0
    %1597 = vmatprep.subr.bf16.mxu0 0
    %1598 = vmatpush2.bf16.msra.mxu0 0
    %1599 = vmatprep.mubr.bf16.mxu0 0
    %1600 = vmatmul.mubr.bf16.gmra.mxu0 %v1463
    %v1601 = vpop.f32.mrf.mxu0
    %v1602 = vadd.f32 0.0, %v1601
    %v1603 = vpop.f32.mrf.mxu0
    %v1604 = vpop.f32.mrf.mxu0
    %v1605 = vadd.f32 0.0, %v1604
    %v1606 = vpop.f32.mrf.mxu0
    %1607 = vmatprep.mubr.bf16.mxu0 0
    %1608 = vmatmul.mubr.bf16.gmra.mxu0 %v1464
    %v1609 = vpop.f32.mrf.mxu0
    %v1610 = vadd.f32 0.0, %v1609
    %v1611 = vpop.f32.mrf.mxu0
    %v1612 = vpop.f32.mrf.mxu0
    %v1613 = vadd.f32 0.0, %v1612
    %v1614 = vpop.f32.mrf.mxu0
    %1615 = vmatprep.mubr.bf16.mxu0 0
    %1616 = vmatmul.mubr.bf16.gmra.mxu0 %v1465
    %v1617 = vpop.f32.mrf.mxu0
    %v1618 = vadd.f32 0.0, %v1617
    %v1619 = vpop.f32.mrf.mxu0
    %v1620 = vpop.f32.mrf.mxu0
    %v1621 = vadd.f32 0.0, %v1620
    %v1622 = vpop.f32.mrf.mxu0
    %1623 = vmatprep.mubr.bf16.mxu0 0
    %1624 = vmatmul.mubr.bf16.gmra.mxu0 %v1466
    %v1625 = vpop.f32.mrf.mxu0
    %v1626 = vadd.f32 0.0, %v1625
    %v1627 = vpop.f32.mrf.mxu0
    %v1628 = vpop.f32.mrf.mxu0
    %v1629 = vadd.f32 0.0, %v1628
    %v1630 = vpop.f32.mrf.mxu0
    %1631 = vdwg.mxu0
    %v1648 = vunpack.c.l.b16 %v1414
    %v1649 = vunpack.c.l.b16 %v1415
    %v1650 = vunpack.c.l.b16 %v1416
    %v1651 = vunpack.c.l.b16 %v1417
    %v1652 = vunpack.c.l.b16 %v1418
    %v1653 = vunpack.c.l.b16 %v1419
    %v1654 = vunpack.c.l.b16 %v1420
    %v1655 = vunpack.c.l.b16 %v1421
    %v1656 = vunpack.c.l.b16 %v1422
    %v1657 = vunpack.c.l.b16 %v1423
    %v1658 = vunpack.c.l.b16 %v1424
    %v1659 = vunpack.c.l.b16 %v1425
    %v1660 = vunpack.c.l.b16 %v1426
    %v1661 = vunpack.c.l.b16 %v1427
    %v1662 = vunpack.c.l.b16 %v1428
    %v1663 = vunpack.c.l.b16 %v1429
    %v1664 = vpack.c.b16 %v1649, %v1648
    %v1665 = vpack.c.b16 %v1651, %v1650
    %v1666 = vpack.c.b16 %v1653, %v1652
    %v1667 = vpack.c.b16 %v1655, %v1654
    %v1668 = vpack.c.b16 %v1657, %v1656
    %v1669 = vpack.c.b16 %v1659, %v1658
    %v1670 = vpack.c.b16 %v1661, %v1660
    %v1671 = vpack.c.b16 %v1663, %v1662
    %1680 = vmatprep.subr.bf16.mxu0 0
    %1681 = vmatpush1.bf16.msra.mxu0 %v1671
    %1682 = vmatprep.subr.bf16.mxu0 0
    %1683 = vmatpush1.bf16.msra.mxu0 %v1670
    %1684 = vmatprep.subr.bf16.mxu0 0
    %1685 = vmatpush1.bf16.msra.mxu0 %v1669
    %1686 = vmatprep.subr.bf16.mxu0 0
    %1687 = vmatpush1.bf16.msra.mxu0 %v1668
    %1688 = vmatprep.subr.bf16.mxu0 0
    %1689 = vmatpush1.bf16.msra.mxu0 %v1667
    %1690 = vmatprep.subr.bf16.mxu0 0
    %1691 = vmatpush1.bf16.msra.mxu0 %v1666
    %1692 = vmatprep.subr.bf16.mxu0 0
    %1693 = vmatpush1.bf16.msra.mxu0 %v1665
    %1694 = vmatprep.subr.bf16.mxu0 0
    %1695 = vmatpush1.bf16.msra.mxu0 %v1664
    %1696 = vmatprep.subr.bf16.mxu0 0
    %1697 = vmatpush2.bf16.msra.mxu0 0
    %1698 = vmatprep.subr.bf16.mxu0 0
    %1699 = vmatpush2.bf16.msra.mxu0 0
    %1700 = vmatprep.subr.bf16.mxu0 0
    %1701 = vmatpush2.bf16.msra.mxu0 0
    %1702 = vmatprep.subr.bf16.mxu0 0
    %1703 = vmatpush2.bf16.msra.mxu0 0
    %1704 = vmatprep.subr.bf16.mxu0 0
    %1705 = vmatpush2.bf16.msra.mxu0 0
    %1706 = vmatprep.subr.bf16.mxu0 0
    %1707 = vmatpush2.bf16.msra.mxu0 0
    %1708 = vmatprep.subr.bf16.mxu0 0
    %1709 = vmatpush2.bf16.msra.mxu0 0
    %1710 = vmatprep.subr.bf16.mxu0 0
    %1711 = vmatpush2.bf16.msra.mxu0 0
    %1712 = vmatprep.mubr.bf16.mxu0 0
    %1713 = vmatmul.mubr.bf16.gmra.mxu0 %v1499
    %v1714 = vpop.f32.mrf.mxu0
    %v1715 = vadd.f32 %v1602, %v1714
    %v1716 = vpop.f32.mrf.mxu0
    %v1717 = vpop.f32.mrf.mxu0
    %v1718 = vadd.f32 %v1605, %v1717
    %v1719 = vpop.f32.mrf.mxu0
    %1720 = vmatprep.mubr.bf16.mxu0 0
    %1721 = vmatmul.mubr.bf16.gmra.mxu0 %v1500
    %v1722 = vpop.f32.mrf.mxu0
    %v1723 = vadd.f32 %v1610, %v1722
    %v1724 = vpop.f32.mrf.mxu0
    %v1725 = vpop.f32.mrf.mxu0
    %v1726 = vadd.f32 %v1613, %v1725
    %v1727 = vpop.f32.mrf.mxu0
    %1728 = vmatprep.mubr.bf16.mxu0 0
    %1729 = vmatmul.mubr.bf16.gmra.mxu0 %v1501
    %v1730 = vpop.f32.mrf.mxu0
    %v1731 = vadd.f32 %v1618, %v1730
    %v1732 = vpop.f32.mrf.mxu0
    %v1733 = vpop.f32.mrf.mxu0
    %v1734 = vadd.f32 %v1621, %v1733
    %v1735 = vpop.f32.mrf.mxu0
    %1736 = vmatprep.mubr.bf16.mxu0 0
    %1737 = vmatmul.mubr.bf16.gmra.mxu0 %v1502
    %v1738 = vpop.f32.mrf.mxu0
    %v1739 = vadd.f32 %v1626, %v1738
    %v1740 = vpop.f32.mrf.mxu0
    %v1741 = vpop.f32.mrf.mxu0
    %v1742 = vadd.f32 %v1629, %v1741
    %v1743 = vpop.f32.mrf.mxu0
    %1744 = vdwg.mxu0
    %v1761 = vunpack.c.l.b16 %v1446
    %v1762 = vunpack.c.l.b16 %v1447
    %v1763 = vunpack.c.l.b16 %v1448
    %v1764 = vunpack.c.l.b16 %v1449
    %v1765 = vunpack.c.l.b16 %v1450
    %v1766 = vunpack.c.l.b16 %v1451
    %v1767 = vunpack.c.l.b16 %v1452
    %v1768 = vunpack.c.l.b16 %v1453
    %v1769 = vunpack.c.l.b16 %v1454
    %v1770 = vunpack.c.l.b16 %v1455
    %v1771 = vunpack.c.l.b16 %v1456
    %v1772 = vunpack.c.l.b16 %v1457
    %v1773 = vunpack.c.l.b16 %v1458
    %v1774 = vunpack.c.l.b16 %v1459
    %v1775 = vunpack.c.l.b16 %v1460
    %v1776 = vunpack.c.l.b16 %v1461
    %v1777 = vpack.c.b16 %v1762, %v1761
    %v1778 = vpack.c.b16 %v1764, %v1763
    %v1779 = vpack.c.b16 %v1766, %v1765
    %v1780 = vpack.c.b16 %v1768, %v1767
    %v1781 = vpack.c.b16 %v1770, %v1769
    %v1782 = vpack.c.b16 %v1772, %v1771
    %v1783 = vpack.c.b16 %v1774, %v1773
    %v1784 = vpack.c.b16 %v1776, %v1775
    %1793 = vmatprep.subr.bf16.mxu0 0
    %1794 = vmatpush1.bf16.msra.mxu0 %v1784
    %1795 = vmatprep.subr.bf16.mxu0 0
    %1796 = vmatpush1.bf16.msra.mxu0 %v1783
    %1797 = vmatprep.subr.bf16.mxu0 0
    %1798 = vmatpush1.bf16.msra.mxu0 %v1782
    %1799 = vmatprep.subr.bf16.mxu0 0
    %1800 = vmatpush1.bf16.msra.mxu0 %v1781
    %1801 = vmatprep.subr.bf16.mxu0 0
    %1802 = vmatpush1.bf16.msra.mxu0 %v1780
    %1803 = vmatprep.subr.bf16.mxu0 0
    %1804 = vmatpush1.bf16.msra.mxu0 %v1779
    %1805 = vmatprep.subr.bf16.mxu0 0
    %1806 = vmatpush1.bf16.msra.mxu0 %v1778
    %1807 = vmatprep.subr.bf16.mxu0 0
    %1808 = vmatpush1.bf16.msra.mxu0 %v1777
    %1809 = vmatprep.subr.bf16.mxu0 0
    %1810 = vmatpush2.bf16.msra.mxu0 0
    %1811 = vmatprep.subr.bf16.mxu0 0
    %1812 = vmatpush2.bf16.msra.mxu0 0
    %1813 = vmatprep.subr.bf16.mxu0 0
    %1814 = vmatpush2.bf16.msra.mxu0 0
    %1815 = vmatprep.subr.bf16.mxu0 0
    %1816 = vmatpush2.bf16.msra.mxu0 0
    %1817 = vmatprep.subr.bf16.mxu0 0
    %1818 = vmatpush2.bf16.msra.mxu0 0
    %1819 = vmatprep.subr.bf16.mxu0 0
    %1820 = vmatpush2.bf16.msra.mxu0 0
    %1821 = vmatprep.subr.bf16.mxu0 0
    %1822 = vmatpush2.bf16.msra.mxu0 0
    %1823 = vmatprep.subr.bf16.mxu0 0
    %1824 = vmatpush2.bf16.msra.mxu0 0
    %1825 = vmatprep.mubr.bf16.mxu0 0
    %1826 = vmatmul.mubr.bf16.gmra.mxu0 %v1515
    %v1827 = vpop.f32.mrf.mxu0
    %v1828 = vadd.f32 0.0, %v1827
    %v1829 = vpop.f32.mrf.mxu0
    %v1830 = vpop.f32.mrf.mxu0
    %v1831 = vadd.f32 0.0, %v1830
    %v1832 = vpop.f32.mrf.mxu0
    %1833 = vmatprep.mubr.bf16.mxu0 0
    %1834 = vmatmul.mubr.bf16.gmra.mxu0 %v1516
    %v1835 = vpop.f32.mrf.mxu0
    %v1836 = vadd.f32 0.0, %v1835
    %v1837 = vpop.f32.mrf.mxu0
    %v1838 = vpop.f32.mrf.mxu0
    %v1839 = vadd.f32 0.0, %v1838
    %v1840 = vpop.f32.mrf.mxu0
    %1841 = vmatprep.mubr.bf16.mxu0 0
    %1842 = vmatmul.mubr.bf16.gmra.mxu0 %v1517
    %v1843 = vpop.f32.mrf.mxu0
    %v1844 = vadd.f32 0.0, %v1843
    %v1845 = vpop.f32.mrf.mxu0
    %v1846 = vpop.f32.mrf.mxu0
    %v1847 = vadd.f32 0.0, %v1846
    %v1848 = vpop.f32.mrf.mxu0
    %1849 = vmatprep.mubr.bf16.mxu0 0
    %1850 = vmatmul.mubr.bf16.gmra.mxu0 %v1518
    %v1851 = vpop.f32.mrf.mxu0
    %v1852 = vadd.f32 0.0, %v1851
    %v1853 = vpop.f32.mrf.mxu0
    %v1854 = vpop.f32.mrf.mxu0
    %v1855 = vadd.f32 0.0, %v1854
    %v1856 = vpop.f32.mrf.mxu0
    %1857 = vdwg.mxu0
    %v1858 = vadd.f32 %v1715, %v1828
    %v1859 = vadd.f32 %v1718, %v1831
    %v1860 = vadd.f32 %v1723, %v1836
    %v1861 = vadd.f32 %v1726, %v1839
    %v1862 = vadd.f32 %v1731, %v1844
    %v1863 = vadd.f32 %v1734, %v1847
    %v1864 = vadd.f32 %v1739, %v1852
    %v1865 = vadd.f32 %v1742, %v1855
    %v1867 = vlaneseq
    %v1868 = vshrl.u32 %v1867, 7
    %v1869 = vsub.s32 0, %v1868
    %v1870 = vrot.slane %v1462, %v1869
    %v1872 = vadd.f32 %v1858, %v1870
    %v1873 = vadd.f32 %v1859, %v1870
    %v1874 = vadd.f32 %v1860, %v1870
    %v1875 = vadd.f32 %v1861, %v1870
    %v1876 = vadd.f32 %v1862, %v1870
    %v1877 = vadd.f32 %v1863, %v1870
    %v1878 = vadd.f32 %v1864, %v1870
    %v1879 = vadd.f32 %v1865, %v1870
    %v1880 = vadd.f32 %v96, %v1872
    %v1881 = vadd.f32 %v97, %v1873
    %v1882 = vadd.f32 %v98, %v1874
    %v1883 = vadd.f32 %v99, %v1875
    %v1884 = vadd.f32 %v100, %v1876
    %v1885 = vadd.f32 %v101, %v1877
    %v1886 = vadd.f32 %v102, %v1878
    %v1887 = vadd.f32 %v103, %v1879
    %v1888 = vpack.c.bf16 %v1881, %v1880
    %v1889 = vpack.c.bf16 %v1883, %v1882
    %v1890 = vpack.c.bf16 %v1885, %v1884
    %v1891 = vpack.c.bf16 %v1887, %v1886
    %v1896 = vunpack.c.l.b16 %v1888
    %v1897 = vunpack.c.h.b16 %v1888
    %v1898 = vunpack.c.l.b16 %v1889
    %v1899 = vunpack.c.h.b16 %v1889
    %v1900 = vunpack.c.l.b16 %v1890
    %v1901 = vunpack.c.h.b16 %v1890
    %v1902 = vunpack.c.l.b16 %v1891
    %v1903 = vunpack.c.h.b16 %v1891
    %v1904 = vpack.c.b16 %v1896, %v1896
    %v1905 = vpack.c.b16 %v1897, %v1897
    %v1906 = vpack.c.b16 %v1898, %v1898
    %v1907 = vpack.c.b16 %v1899, %v1899
    %v1908 = vpack.c.b16 %v1900, %v1900
    %v1909 = vpack.c.b16 %v1901, %v1901
    %v1910 = vpack.c.b16 %v1902, %v1902
    %v1911 = vpack.c.b16 %v1903, %v1903
    %1920 = vst [vmem:[#allocation7] sm:$0xf] %v1904
    %1921 = vst [vmem:[#allocation7 + $0x4] sm:$0xf] %v1905
    %1922 = vst [vmem:[#allocation7 + $0x8] sm:$0xf] %v1906
    %1923 = vst [vmem:[#allocation7 + $0xc] sm:$0xf] %v1907
    %1924 = vst [vmem:[#allocation7 + $0x10] sm:$0xf] %v1908
    %1925 = vst [vmem:[#allocation7 + $0x14] sm:$0xf] %v1909
    %1926 = vst [vmem:[#allocation7 + $0x18] sm:$0xf] %v1910
    %1927 = vst [vmem:[#allocation7 + $0x1c] sm:$0xf] %v1911
    // Predicated region
    $region54: #{resnet_block_forward.1} parent=1 // pred_check
      _
    $region55: #{resnet_block_forward.1} parent=1 // pred_check_branch
      %1929 = sbr.rel (0) target = $region57
    $region56: #{resnet_block_forward.1} parent=1 // pred_region
      %s1931 = ssub.s32 512, 512
      %1932 = vsyncadd [#allocation4], %s1931
      %s1933 = sshll.u32 [#allocation7], 4
      %s1934 = int_to_ptr.vmem [resolvable:$true] %s1933
      %1939 = dma.vmem_to_hbm [thread:$0]  %s1934, 512, %s11, [#allocation4], 64, 64, 4
    $region57: #{resnet_block_forward.1} parent=1 // pred_fallthru
      _
    // Predicated region
    $region58: #{resnet_block_forward.1} parent=1 // pred_check
      _
    $region59: #{resnet_block_forward.1} parent=1 // pred_check_branch
      %1941 = sbr.rel (0) target = $region61
    $region60: #{resnet_block_forward.1} parent=1 // pred_region
      %1942 = dma.done [#allocation4], 512
    $region61: #{resnet_block_forward.1} parent=1 // pred_fallthru
      _
    %1943 = vsyncpa [#allocation3], 1
    %1944 = vsyncpa [#allocation6], 1
    %1945 = vsyncpa [#allocation4], 1

</llo_original>
